<compile_context>
chip_gen: v5e
topology: v5e:2x2
jax: 0.10.0
libtpu: 0.0.40
codegen_flags: <defaults>
</compile_context>

<pallas_src>
import jax
import jax.numpy as jnp
import numpy as np
from jax.experimental import pallas as pl
from jax.experimental.pallas import tpu as pltpu

LANE = 128
SUBLANE = 8
TM_MAX = 1024                      # row-tile cap (per perf review)
X_TILE_BYTES = 4 * 1024 * 1024     # per-buffer budget for the x row-tile


def _round_up(x, m):
    return ((x + m - 1) // m) * m


def mlp_kernel(x_ref, w1_ref, b1_ref, w2_ref, b2_ref, w3_ref, b3_ref, o_ref):
    # One activation row-tile + all (VMEM-resident) weights; all three layers
    # fused so the 128-wide intermediates never touch HBM.
    x = x_ref[...].astype(jnp.bfloat16)                                  # (tm, in_p)

    h1 = jnp.dot(x, w1_ref[...], preferred_element_type=jnp.float32)    # MXU
    h1 = jnp.maximum(h1 + b1_ref[...], 0.0)                             # bias+ReLU (VPU)

    h2 = jnp.dot(h1.astype(jnp.bfloat16), w2_ref[...],
                 preferred_element_type=jnp.float32)                    # MXU
    h2 = jax.nn.sigmoid(h2 + b2_ref[...])                               # EUP exp

    y = jnp.dot(h2.astype(jnp.bfloat16), w3_ref[...],
                preferred_element_type=jnp.float32)                     # MXU
    o_ref[...] = (y + b3_ref[...]).astype(o_ref.dtype)                  # lane-dense store


def prepare_params(params):
    """Zero-pad all feature dims to multiples of 128; cast weights to bf16.

    Weights are (in, out) = transposed PyTorch layout; biases are (1, out) f32.
    Zero padding keeps results exactly equal to the unpadded network (w3's padded
    K-rows are zero, so the sigmoid(0)=0.5 padded lanes of h2 contribute nothing).
    """
    w1, b1, w2, b2, w3, b3 = params

    def pad2(a, rows, cols):
        r, c = a.shape
        return jnp.pad(a, ((0, rows - r), (0, cols - c)))

    in_p = _round_up(w1.shape[0], LANE)
    h1_p = _round_up(w1.shape[1], LANE)
    h2_p = _round_up(w2.shape[1], LANE)
    out_p = _round_up(w3.shape[1], LANE)

    w1p = pad2(w1, in_p, h1_p).astype(jnp.bfloat16)
    w2p = pad2(w2, h1_p, h2_p).astype(jnp.bfloat16)
    w3p = pad2(w3, h2_p, out_p).astype(jnp.bfloat16)
    b1p = pad2(b1, 1, h1_p).astype(jnp.float32)
    b2p = pad2(b2, 1, h2_p).astype(jnp.float32)
    b3p = pad2(b3, 1, out_p).astype(jnp.float32)
    return (w1p, b1p, w2p, b2p, w3p, b3p)


def _choose_row_tile(rows, in_p, x_itemsize):
    """Row tile: sublane-aligned, >=2 grid steps when rows > 8 (v7x dual-TC),
    capped so a single double-buffered x tile stays under v5e's scoped VMEM."""
    budget_rows = max(SUBLANE, X_TILE_BYTES // (x_itemsize * in_p))
    tm_cap = max(SUBLANE, min(TM_MAX, (budget_rows // SUBLANE) * SUBLANE))
    if rows <= SUBLANE:
        return SUBLANE
    n_steps = max(2, pl.cdiv(rows, tm_cap))
    return min(_round_up(pl.cdiv(rows, n_steps), SUBLANE), tm_cap)


def mlp_forward(x, padded_params, out_dim):
    """x: (B, C, H, W) float32 (or bf16). Returns (B, out_dim) float32."""
    w1, b1, w2, b2, w3, b3 = padded_params
    B = x.shape[0]
    x2d = x.reshape(B, -1)          # no standalone dtype cast; kernel casts in-VMEM
    in_dim = x2d.shape[1]

    in_p, h1_p = w1.shape
    h2_p = w2.shape[1]
    out_p = w3.shape[1]

    # Single combined pad: feature lanes up to in_p, and rows up to one sublane
    # tile only when B < 8.  No batch pad for large B (partial last block is
    # handled by pl.cdiv grid + masked writes).
    rows = B if B >= SUBLANE else SUBLANE
    pad_r, pad_c = rows - B, in_p - in_dim
    if pad_r or pad_c:
        x2d = jnp.pad(x2d, ((0, pad_r), (0, pad_c)))

    tm = _choose_row_tile(rows, in_p, x2d.dtype.itemsize)
    grid = (pl.cdiv(rows, tm),)

    flops = 2 * B * (in_p * h1_p + h1_p * h2_p + h2_p * out_p)
    bytes_accessed = (x2d.size * x2d.dtype.itemsize + rows * out_p * 4
                      + (w1.size + w2.size + w3.size) * 2
                      + (b1.size + b2.size + b3.size) * 4)

    def run(single_buffer_weights):
        def wspec(shape):
            # Grid-invariant operands: stay VMEM-resident; single-buffered when
            # this jax supports pipeline_mode (saves ~0.3 MiB of VMEM headroom).
            if single_buffer_weights:
                return pl.BlockSpec(shape, lambda i: (0, 0),
                                    pipeline_mode=pl.Buffered(1))
            return pl.BlockSpec(shape, lambda i: (0, 0))

        return pl.pallas_call(
            mlp_kernel,
            out_shape=jax.ShapeDtypeStruct((rows, out_p), jnp.float32),
            grid=grid,
            in_specs=[
                pl.BlockSpec((tm, in_p), lambda i: (i, 0)),   # activation row tile
                wspec(w1.shape), wspec(b1.shape),
                wspec(w2.shape), wspec(b2.shape),
                wspec(w3.shape), wspec(b3.shape),
            ],
            out_specs=pl.BlockSpec((tm, out_p), lambda i: (i, 0)),
            compiler_params=pltpu.CompilerParams(
                dimension_semantics=("parallel",)),
            cost_estimate=pl.CostEstimate(flops=flops,
                                          transcendentals=B * h2_p,
                                          bytes_accessed=bytes_accessed),
        )(x2d, w1, b1, w2, b2, w3, b3)

    try:
        out = run(single_buffer_weights=True)
    except Exception:
        # pipeline_mode=pl.Buffered(1) not supported on this jax version; the
        # default double-buffered weights only cost ~0.3 MiB extra VMEM.
        out = run(single_buffer_weights=False)

    return out[:B, :out_dim]


def init_params(key, in_dim, out_dim=1):
    """Deterministic init mimicking nn.Linear (uniform +/- 1/sqrt(fan_in)).
    Weights (in, out) f32; biases (1, out) f32 (unpadded / un-cast)."""
    dims = [(in_dim, 120), (120, 80), (80, out_dim)]
    params = []
    for (fi, fo) in dims:
        key, kw, kb = jax.random.split(key, 3)
        bound = 1.0 / np.sqrt(fi)
        w = jax.random.uniform(kw, (fi, fo), jnp.float32, -bound, bound)
        b = jax.random.uniform(kb, (1, fo), jnp.float32, -bound, bound)
        params += [w, b]
    return tuple(params)


def mlp_reference(x, params):
    """Plain-JAX reference of the PyTorch forward, using the same bf16-rounded
    weights the kernel consumes (f32 activations / accumulation)."""
    w1, b1, w2, b2, w3, b3 = params
    bf = lambda w: w.astype(jnp.bfloat16).astype(jnp.float32)
    B = x.shape[0]
    h = x.reshape(B, -1).astype(jnp.float32)
    h = jnp.maximum(h @ bf(w1) + b1, 0.0)
    h = jax.nn.sigmoid(h @ bf(w2) + b2)
    return h @ bf(w3) + b3


if __name__ == "__main__":
    key = jax.random.PRNGKey(0)
    key, kx, kx2 = jax.random.split(key, 3)

    # Small shapes consistent with the module: x is (B, C, H, W), in_dim = C*H*W.
    B, C, H, W = 2, 4, 16, 16
    in_dim = C * H * W          # 1024
    out_dim = 1

    params = init_params(key, in_dim, out_dim)
    padded_params = prepare_params(params)

    # Case 1: tiny batch (single padded row tile).
    x = jax.random.normal(kx, (B, C, H, W), jnp.float32)
    y = jax.block_until_ready(mlp_forward(x, padded_params, out_dim))
    y_ref = mlp_reference(x, params)
    assert y.shape == (B, out_dim)
    # Kernel casts activations to bf16 before each MXU dot (f32 accumulation),
    # so allow a small tolerance vs. the f32-activation reference.
    np.testing.assert_allclose(np.asarray(y), np.asarray(y_ref), rtol=2e-2, atol=2e-2)

    # Case 2: multi-step grid with a partial last row block (no batch pad).
    B2 = 20
    x2 = jax.random.normal(kx2, (B2, C, H, W), jnp.float32)
    y2 = jax.block_until_ready(mlp_forward(x2, padded_params, out_dim))
    y2_ref = mlp_reference(x2, params)
    assert y2.shape == (B2, out_dim)
    np.testing.assert_allclose(np.asarray(y2), np.asarray(y2_ref), rtol=2e-2, atol=2e-2)

    print("KERNEL_OK")
</pallas_src>

<mosaic_0001>
module attributes {stable_mosaic.version = 11 : i64} {
  func.func @mlp_kernel(%arg0: i32, %arg1: memref<8x1024xf32, #tpu.memory_space<vmem>>, %arg2: memref<1024x128xbf16, #tpu.memory_space<vmem>>, %arg3: memref<1x128xf32, #tpu.memory_space<vmem>>, %arg4: memref<128x128xbf16, #tpu.memory_space<vmem>>, %arg5: memref<1x128xf32, #tpu.memory_space<vmem>>, %arg6: memref<128x128xbf16, #tpu.memory_space<vmem>>, %arg7: memref<1x128xf32, #tpu.memory_space<vmem>>, %arg8: memref<8x128xf32, #tpu.memory_space<vmem>>) attributes {dimension_semantics = [#tpu.dimension_semantics<parallel>], iteration_bounds = array<i64: 1>, scalar_prefetch = 0 : i64, scratch_operands = 0 : i64, tpu.core_type = #tpu.core_type<tc>, window_params = [{transform_indices = @transform_0, window_bounds = array<i64: 8, 1024>}, {pipeline_mode = #tpu.pipeline_mode<synchronous>, transform_indices = @transform_1, window_bounds = array<i64: 1024, 128>}, {pipeline_mode = #tpu.pipeline_mode<synchronous>, transform_indices = @transform_2, window_bounds = array<i64: 1, 128>}, {pipeline_mode = #tpu.pipeline_mode<synchronous>, transform_indices = @transform_3, window_bounds = array<i64: 128, 128>}, {pipeline_mode = #tpu.pipeline_mode<synchronous>, transform_indices = @transform_4, window_bounds = array<i64: 1, 128>}, {pipeline_mode = #tpu.pipeline_mode<synchronous>, transform_indices = @transform_5, window_bounds = array<i64: 128, 128>}, {pipeline_mode = #tpu.pipeline_mode<synchronous>, transform_indices = @transform_6, window_bounds = array<i64: 1, 128>}, {transform_indices = @transform_7, window_bounds = array<i64: 8, 128>}]} {
    %c0 = arith.constant 0 : index
    %c0_0 = arith.constant 0 : index
    %0 = vector.load %arg1[%c0, %c0_0] : memref<8x1024xf32, #tpu.memory_space<vmem>>, vector<8x1024xf32>
    %1 = arith.truncf %0 : vector<8x1024xf32> to vector<8x1024xbf16>
    %c0_1 = arith.constant 0 : index
    %c0_2 = arith.constant 0 : index
    %2 = vector.load %arg2[%c0_1, %c0_2] : memref<1024x128xbf16, #tpu.memory_space<vmem>>, vector<1024x128xbf16>
    %cst = arith.constant dense<0.000000e+00> : vector<8x128xf32>
    %3 = tpu.matmul %1, %2, %cst {dimension_numbers = #tpu.dot_dimension_numbers<[1], [0], [0], [1], [0, 0, 1, 1], [], []>} : vector<8x1024xbf16>, vector<1024x128xbf16>, vector<8x128xf32> -> vector<8x128xf32>
    %c0_3 = arith.constant 0 : index
    %c0_4 = arith.constant 0 : index
    %4 = vector.load %arg3[%c0_3, %c0_4] : memref<1x128xf32, #tpu.memory_space<vmem>>, vector<1x128xf32>
    %5 = vector.broadcast %4 : vector<1x128xf32> to vector<8x128xf32>
    %6 = arith.addf %3, %5 : vector<8x128xf32>
    %cst_5 = arith.constant 0.000000e+00 : f32
    %7 = vector.broadcast %cst_5 : f32 to vector<8x128xf32>
    %8 = arith.maximumf %6, %7 : vector<8x128xf32>
    %9 = arith.truncf %8 : vector<8x128xf32> to vector<8x128xbf16>
    %c0_6 = arith.constant 0 : index
    %c0_7 = arith.constant 0 : index
    %10 = vector.load %arg4[%c0_6, %c0_7] : memref<128x128xbf16, #tpu.memory_space<vmem>>, vector<128x128xbf16>
    %cst_8 = arith.constant dense<0.000000e+00> : vector<8x128xf32>
    %11 = tpu.matmul %9, %10, %cst_8 {dimension_numbers = #tpu.dot_dimension_numbers<[1], [0], [0], [1], [0, 0, 1, 1], [], []>} : vector<8x128xbf16>, vector<128x128xbf16>, vector<8x128xf32> -> vector<8x128xf32>
    %c0_9 = arith.constant 0 : index
    %c0_10 = arith.constant 0 : index
    %12 = vector.load %arg5[%c0_9, %c0_10] : memref<1x128xf32, #tpu.memory_space<vmem>>, vector<1x128xf32>
    %13 = vector.broadcast %12 : vector<1x128xf32> to vector<8x128xf32>
    %14 = arith.addf %11, %13 : vector<8x128xf32>
    %15 = arith.negf %14 : vector<8x128xf32>
    %16 = math.exp %15 : vector<8x128xf32>
    %cst_11 = arith.constant 1.000000e+00 : f32
    %17 = vector.broadcast %cst_11 : f32 to vector<8x128xf32>
    %18 = arith.addf %17, %16 : vector<8x128xf32>
    %19 = arith.divf %17, %18 : vector<8x128xf32>
    %20 = arith.truncf %19 : vector<8x128xf32> to vector<8x128xbf16>
    %c0_12 = arith.constant 0 : index
    %c0_13 = arith.constant 0 : index
    %21 = vector.load %arg6[%c0_12, %c0_13] : memref<128x128xbf16, #tpu.memory_space<vmem>>, vector<128x128xbf16>
    %cst_14 = arith.constant dense<0.000000e+00> : vector<8x128xf32>
    %22 = tpu.matmul %20, %21, %cst_14 {dimension_numbers = #tpu.dot_dimension_numbers<[1], [0], [0], [1], [0, 0, 1, 1], [], []>} : vector<8x128xbf16>, vector<128x128xbf16>, vector<8x128xf32> -> vector<8x128xf32>
    %c0_15 = arith.constant 0 : index
    %c0_16 = arith.constant 0 : index
    %23 = vector.load %arg7[%c0_15, %c0_16] : memref<1x128xf32, #tpu.memory_space<vmem>>, vector<1x128xf32>
    %24 = vector.broadcast %23 : vector<1x128xf32> to vector<8x128xf32>
    %25 = arith.addf %22, %24 : vector<8x128xf32>
    %c0_17 = arith.constant 0 : index
    %c0_18 = arith.constant 0 : index
    %26 = vector.load %arg8[%c0_17, %c0_18] : memref<8x128xf32, #tpu.memory_space<vmem>>, vector<8x128xf32>
    tpu.vector_store %arg8[%c0_17, %c0_18], %25 {strides = array<i32>} : memref<8x128xf32, #tpu.memory_space<vmem>>, vector<8x128xf32>,
    return
  }
  func.func @transform_0(%arg0: i32) -> (i32, i32) {
    %c0_i32 = arith.constant 0 : i32
    %c0_i32_0 = arith.constant 0 : i32
    return %arg0, %c0_i32 : i32, i32
  }
  func.func @transform_1(%arg0: i32) -> (i32, i32) {
    %c0_i32 = arith.constant 0 : i32
    %c0_i32_0 = arith.constant 0 : i32
    %c0_i32_1 = arith.constant 0 : i32
    return %c0_i32, %c0_i32_0 : i32, i32
  }
  func.func @transform_2(%arg0: i32) -> (i32, i32) {
    %c0_i32 = arith.constant 0 : i32
    %c0_i32_0 = arith.constant 0 : i32
    %c0_i32_1 = arith.constant 0 : i32
    return %c0_i32, %c0_i32_0 : i32, i32
  }
  func.func @transform_3(%arg0: i32) -> (i32, i32) {
    %c0_i32 = arith.constant 0 : i32
    %c0_i32_0 = arith.constant 0 : i32
    %c0_i32_1 = arith.constant 0 : i32
    return %c0_i32, %c0_i32_0 : i32, i32
  }
  func.func @transform_4(%arg0: i32) -> (i32, i32) {
    %c0_i32 = arith.constant 0 : i32
    %c0_i32_0 = arith.constant 0 : i32
    %c0_i32_1 = arith.constant 0 : i32
    return %c0_i32, %c0_i32_0 : i32, i32
  }
  func.func @transform_5(%arg0: i32) -> (i32, i32) {
    %c0_i32 = arith.constant 0 : i32
    %c0_i32_0 = arith.constant 0 : i32
    %c0_i32_1 = arith.constant 0 : i32
    return %c0_i32, %c0_i32_0 : i32, i32
  }
  func.func @transform_6(%arg0: i32) -> (i32, i32) {
    %c0_i32 = arith.constant 0 : i32
    %c0_i32_0 = arith.constant 0 : i32
    %c0_i32_1 = arith.constant 0 : i32
    return %c0_i32, %c0_i32_0 : i32, i32
  }
  func.func @transform_7(%arg0: i32) -> (i32, i32) {
    %c0_i32 = arith.constant 0 : i32
    %c0_i32_0 = arith.constant 0 : i32
    return %arg0, %c0_i32 : i32, i32
  }
}

module attributes {stable_mosaic.version = 11 : i64} {
  func.func @mlp_kernel(%arg0: i32, %arg1: memref<8x1024xf32, #tpu.memory_space<vmem>>, %arg2: memref<1024x128xbf16, #tpu.memory_space<vmem>>, %arg3: memref<1x128xf32, #tpu.memory_space<vmem>>, %arg4: memref<128x128xbf16, #tpu.memory_space<vmem>>, %arg5: memref<1x128xf32, #tpu.memory_space<vmem>>, %arg6: memref<128x128xbf16, #tpu.memory_space<vmem>>, %arg7: memref<1x128xf32, #tpu.memory_space<vmem>>, %arg8: memref<8x128xf32, #tpu.memory_space<vmem>>) attributes {dimension_semantics = [#tpu.dimension_semantics<parallel>], iteration_bounds = array<i64: 1>, scalar_prefetch = 0 : i64, scratch_operands = 0 : i64, tpu.core_type = #tpu.core_type<tc>, window_params = [{transform_indices = @transform_0, window_bounds = array<i64: 8, 1024>}, {pipeline_mode = #tpu.pipeline_mode<synchronous>, transform_indices = @transform_1, window_bounds = array<i64: 1024, 128>}, {pipeline_mode = #tpu.pipeline_mode<synchronous>, transform_indices = @transform_2, window_bounds = array<i64: 1, 128>}, {pipeline_mode = #tpu.pipeline_mode<synchronous>, transform_indices = @transform_3, window_bounds = array<i64: 128, 128>}, {pipeline_mode = #tpu.pipeline_mode<synchronous>, transform_indices = @transform_4, window_bounds = array<i64: 1, 128>}, {pipeline_mode = #tpu.pipeline_mode<synchronous>, transform_indices = @transform_5, window_bounds = array<i64: 128, 128>}, {pipeline_mode = #tpu.pipeline_mode<synchronous>, transform_indices = @transform_6, window_bounds = array<i64: 1, 128>}, {transform_indices = @transform_7, window_bounds = array<i64: 8, 128>}]} {
    %c0 = arith.constant 0 : index
    %c0_0 = arith.constant 0 : index
    %0 = vector.load %arg1[%c0, %c0_0] : memref<8x1024xf32, #tpu.memory_space<vmem>>, vector<8x1024xf32>
    %1 = arith.truncf %0 : vector<8x1024xf32> to vector<8x1024xbf16>
    %c0_1 = arith.constant 0 : index
    %c0_2 = arith.constant 0 : index
    %2 = vector.load %arg2[%c0_1, %c0_2] : memref<1024x128xbf16, #tpu.memory_space<vmem>>, vector<1024x128xbf16>
    %cst = arith.constant dense<0.000000e+00> : vector<8x128xf32>
    %3 = tpu.matmul %1, %2, %cst {dimension_numbers = #tpu.dot_dimension_numbers<[1], [0], [0], [1], [0, 0, 1, 1], [], []>} : vector<8x1024xbf16>, vector<1024x128xbf16>, vector<8x128xf32> -> vector<8x128xf32>
    %c0_3 = arith.constant 0 : index
    %c0_4 = arith.constant 0 : index
    %4 = vector.load %arg3[%c0_3, %c0_4] : memref<1x128xf32, #tpu.memory_space<vmem>>, vector<1x128xf32>
    %5 = vector.broadcast %4 : vector<1x128xf32> to vector<8x128xf32>
    %6 = arith.addf %3, %5 : vector<8x128xf32>
    %cst_5 = arith.constant 0.000000e+00 : f32
    %7 = vector.broadcast %cst_5 : f32 to vector<8x128xf32>
    %8 = arith.maximumf %6, %7 : vector<8x128xf32>
    %9 = arith.truncf %8 : vector<8x128xf32> to vector<8x128xbf16>
    %c0_6 = arith.constant 0 : index
    %c0_7 = arith.constant 0 : index
    %10 = vector.load %arg4[%c0_6, %c0_7] : memref<128x128xbf16, #tpu.memory_space<vmem>>, vector<128x128xbf16>
    %cst_8 = arith.constant dense<0.000000e+00> : vector<8x128xf32>
    %11 = tpu.matmul %9, %10, %cst_8 {dimension_numbers = #tpu.dot_dimension_numbers<[1], [0], [0], [1], [0, 0, 1, 1], [], []>} : vector<8x128xbf16>, vector<128x128xbf16>, vector<8x128xf32> -> vector<8x128xf32>
    %c0_9 = arith.constant 0 : index
    %c0_10 = arith.constant 0 : index
    %12 = vector.load %arg5[%c0_9, %c0_10] : memref<1x128xf32, #tpu.memory_space<vmem>>, vector<1x128xf32>
    %13 = vector.broadcast %12 : vector<1x128xf32> to vector<8x128xf32>
    %14 = arith.addf %11, %13 : vector<8x128xf32>
    %15 = arith.negf %14 : vector<8x128xf32>
    %16 = math.exp %15 : vector<8x128xf32>
    %cst_11 = arith.constant 1.000000e+00 : f32
    %17 = vector.broadcast %cst_11 : f32 to vector<8x128xf32>
    %18 = arith.addf %17, %16 : vector<8x128xf32>
    %19 = arith.divf %17, %18 : vector<8x128xf32>
    %20 = arith.truncf %19 : vector<8x128xf32> to vector<8x128xbf16>
    %c0_12 = arith.constant 0 : index
    %c0_13 = arith.constant 0 : index
    %21 = vector.load %arg6[%c0_12, %c0_13] : memref<128x128xbf16, #tpu.memory_space<vmem>>, vector<128x128xbf16>
    %cst_14 = arith.constant dense<0.000000e+00> : vector<8x128xf32>
    %22 = tpu.matmul %20, %21, %cst_14 {dimension_numbers = #tpu.dot_dimension_numbers<[1], [0], [0], [1], [0, 0, 1, 1], [], []>} : vector<8x128xbf16>, vector<128x128xbf16>, vector<8x128xf32> -> vector<8x128xf32>
    %c0_15 = arith.constant 0 : index
    %c0_16 = arith.constant 0 : index
    %23 = vector.load %arg7[%c0_15, %c0_16] : memref<1x128xf32, #tpu.memory_space<vmem>>, vector<1x128xf32>
    %24 = vector.broadcast %23 : vector<1x128xf32> to vector<8x128xf32>
    %25 = arith.addf %22, %24 : vector<8x128xf32>
    %c0_17 = arith.constant 0 : index
    %c0_18 = arith.constant 0 : index
    %26 = vector.load %arg8[%c0_17, %c0_18] : memref<8x128xf32, #tpu.memory_space<vmem>>, vector<8x128xf32>
    tpu.vector_store %arg8[%c0_17, %c0_18], %25 {strides = array<i32>} : memref<8x128xf32, #tpu.memory_space<vmem>>, vector<8x128xf32>,
    return
  }
  func.func @transform_0(%arg0: i32) -> (i32, i32) {
    %c0_i32 = arith.constant 0 : i32
    %c0_i32_0 = arith.constant 0 : i32
    return %arg0, %c0_i32 : i32, i32
  }
  func.func @transform_1(%arg0: i32) -> (i32, i32) {
    %c0_i32 = arith.constant 0 : i32
    %c0_i32_0 = arith.constant 0 : i32
    %c0_i32_1 = arith.constant 0 : i32
    return %c0_i32, %c0_i32_0 : i32, i32
  }
  func.func @transform_2(%arg0: i32) -> (i32, i32) {
    %c0_i32 = arith.constant 0 : i32
    %c0_i32_0 = arith.constant 0 : i32
    %c0_i32_1 = arith.constant 0 : i32
    return %c0_i32, %c0_i32_0 : i32, i32
  }
  func.func @transform_3(%arg0: i32) -> (i32, i32) {
    %c0_i32 = arith.constant 0 : i32
    %c0_i32_0 = arith.constant 0 : i32
    %c0_i32_1 = arith.constant 0 : i32
    return %c0_i32, %c0_i32_0 : i32, i32
  }
  func.func @transform_4(%arg0: i32) -> (i32, i32) {
    %c0_i32 = arith.constant 0 : i32
    %c0_i32_0 = arith.constant 0 : i32
    %c0_i32_1 = arith.constant 0 : i32
    return %c0_i32, %c0_i32_0 : i32, i32
  }
  func.func @transform_5(%arg0: i32) -> (i32, i32) {
    %c0_i32 = arith.constant 0 : i32
    %c0_i32_0 = arith.constant 0 : i32
    %c0_i32_1 = arith.constant 0 : i32
    return %c0_i32, %c0_i32_0 : i32, i32
  }
  func.func @transform_6(%arg0: i32) -> (i32, i32) {
    %c0_i32 = arith.constant 0 : i32
    %c0_i32_0 = arith.constant 0 : i32
    %c0_i32_1 = arith.constant 0 : i32
    return %c0_i32, %c0_i32_0 : i32, i32
  }
  func.func @transform_7(%arg0: i32) -> (i32, i32) {
    %c0_i32 = arith.constant 0 : i32
    %c0_i32_0 = arith.constant 0 : i32
    return %arg0, %c0_i32 : i32, i32
  }
}

</mosaic_0001>

<llo_original>
// kernel: tpu_custom_call.1
$region0: #{tpu_custom_call.1}
  #allocation0 [shape = 'u32[]', space=smem, size = 0x4, offset = 0x4, fixed_abs, tag = 'smem constant byte address 0x4 - core index']
  #allocation1 [shape = 'u32[72,128]{1,0:T(1,128)}', space=vmem, size = 0x9000, scoped, tag = 'internal scratch']
  %s0 = inlined_call_operand.hbm [shape: f32[8,1024], index: 0, kind: input, shape index: {}]
  %s1 = inlined_call_operand.hbm [shape: bf16[1024,128], index: 1, kind: input, shape index: {}]
  %s2 = inlined_call_operand.vmem [shape: f32[1,128], index: 2, kind: input, shape index: {}]
  %s3 = inlined_call_operand.hbm [shape: bf16[128,128], index: 3, kind: input, shape index: {}]
  %s4 = inlined_call_operand.vmem [shape: f32[1,128], index: 4, kind: input, shape index: {}]
  %s5 = inlined_call_operand.hbm [shape: bf16[128,128], index: 5, kind: input, shape index: {}]
  %s6 = inlined_call_operand.vmem [shape: f32[1,128], index: 6, kind: input, shape index: {}]
  %s7 = inlined_call_operand.hbm [shape: f32[8,128], index: 7, kind: output, shape index: {}]
  %s8 = sld [smem:[#allocation0]]
  $region54: #{tpu_custom_call.1} parent=0
    _
  %s10 = ssub.s32 1, %s8
  %s11 = scalar_select 0, %s10, %s8
  $region1: #{tpu_custom_call.1} parent=0
    #allocation2 [shape = 'u8[32768]{0}', space=vmem, size = 0x8000, scoped, tag = 'input window, operand 0, single buffered']
    #allocation3 [shape = 's32[1]{0}', space=sflag, size = 0x4, scoped, tag = 'scoped memory for tpu_custom_call.1']
    #allocation4 [shape = 's32[1]{0}', space=sflag, size = 0x4, scoped, tag = 'scoped memory for tpu_custom_call.1']
    #allocation5 [shape = 'u8[262144]{0}', space=vmem, size = 0x40000, scoped, tag = 'input window, operand 1, single buffered']
    #allocation6 [shape = 's32[1]{0}', space=sflag, size = 0x4, scoped, tag = 'scoped memory for tpu_custom_call.1']
    #allocation7 [shape = 'u8[32768]{0}', space=vmem, size = 0x8000, scoped, tag = 'input window, operand 3, single buffered']
    #allocation8 [shape = 'u8[32768]{0}', space=vmem, size = 0x8000, scoped, tag = 'input window, operand 5, single buffered']
    #allocation9 [shape = 's32[1]{0}', space=sflag, size = 0x4, scoped, tag = 'scoped memory for tpu_custom_call.1']
    #allocation10 [shape = 'u8[4096]{0}', space=vmem, size = 0x1000, scoped, tag = 'output window, operand 0, single buffered']
    %12 = vsyncpa [#allocation3], 0
    %13 = vsyncpa [#allocation6], 0
    %14 = vsyncpa [#allocation9], 0
    %15 = vsyncpa [#allocation4], 0
    // Predicated region
    $region2: #{tpu_custom_call.1} parent=1 // pred_check
      _
    $region3: #{tpu_custom_call.1} parent=1 // pred_check_branch
      %17 = sbr.rel (0) target = $region5
    $region4: #{tpu_custom_call.1} parent=1 // pred_region
      %19 = vsyncadd [#allocation3], 0
      %s21 = sshll.u32 %s0, 4
      %s22 = int_to_ptr.hbm [resolvable:$true] %s21
      %s23 = sshll.u32 [#allocation2], 4
      %s24 = int_to_ptr.vmem [resolvable:$true] %s23
      %26 = dma.hbm_to_vmem [thread:$0]  %s22, 1024, %s24, [#allocation3]
    $region5: #{tpu_custom_call.1} parent=1 // pred_fallthru
      _
    // Predicated region
    $region6: #{tpu_custom_call.1} parent=1 // pred_check
      _
    $region7: #{tpu_custom_call.1} parent=1 // pred_check_branch
      %28 = sbr.rel (0) target = $region9
    $region8: #{tpu_custom_call.1} parent=1 // pred_region
      %30 = vsyncadd [#allocation6], 0
      %s31 = sshll.u32 %s1, 4
      %s32 = int_to_ptr.hbm [resolvable:$true] %s31
      %s33 = sshll.u32 [#allocation5], 4
      %s34 = int_to_ptr.vmem [resolvable:$true] %s33
      %39 = dma.hbm_to_vmem [thread:$0]  %s32, 8192, %s34, [#allocation6], 64, 64, 4
    $region9: #{tpu_custom_call.1} parent=1 // pred_fallthru
      _
    // Predicated region
    $region10: #{tpu_custom_call.1} parent=1 // pred_check
      _
    $region11: #{tpu_custom_call.1} parent=1 // pred_check_branch
      %41 = sbr.rel (0) target = $region13
    $region12: #{tpu_custom_call.1} parent=1 // pred_region
      _
    $region13: #{tpu_custom_call.1} parent=1 // pred_fallthru
      _
    // Predicated region
    $region14: #{tpu_custom_call.1} parent=1 // pred_check
      _
    $region15: #{tpu_custom_call.1} parent=1 // pred_check_branch
      %43 = sbr.rel (0) target = $region17
    $region16: #{tpu_custom_call.1} parent=1 // pred_region
      %45 = vsyncadd [#allocation6], 0
      %s46 = sshll.u32 %s3, 4
      %s47 = int_to_ptr.hbm [resolvable:$true] %s46
      %s48 = sshll.u32 [#allocation7], 4
      %s49 = int_to_ptr.vmem [resolvable:$true] %s48
      %54 = dma.hbm_to_vmem [thread:$0]  %s47, 1024, %s49, [#allocation6], 64, 64, 4
    $region17: #{tpu_custom_call.1} parent=1 // pred_fallthru
      _
    // Predicated region
    $region18: #{tpu_custom_call.1} parent=1 // pred_check
      _
    $region19: #{tpu_custom_call.1} parent=1 // pred_check_branch
      %56 = sbr.rel (0) target = $region21
    $region20: #{tpu_custom_call.1} parent=1 // pred_region
      _
    $region21: #{tpu_custom_call.1} parent=1 // pred_fallthru
      _
    // Predicated region
    $region22: #{tpu_custom_call.1} parent=1 // pred_check
      _
    $region23: #{tpu_custom_call.1} parent=1 // pred_check_branch
      %58 = sbr.rel (0) target = $region25
    $region24: #{tpu_custom_call.1} parent=1 // pred_region
      %60 = vsyncadd [#allocation9], 0
      %s61 = sshll.u32 %s5, 4
      %s62 = int_to_ptr.hbm [resolvable:$true] %s61
      %s63 = sshll.u32 [#allocation8], 4
      %s64 = int_to_ptr.vmem [resolvable:$true] %s63
      %69 = dma.hbm_to_vmem [thread:$0]  %s62, 1024, %s64, [#allocation9], 64, 64, 4
    $region25: #{tpu_custom_call.1} parent=1 // pred_fallthru
      _
    // Predicated region
    $region26: #{tpu_custom_call.1} parent=1 // pred_check
      _
    $region27: #{tpu_custom_call.1} parent=1 // pred_check_branch
      %71 = sbr.rel (0) target = $region29
    $region28: #{tpu_custom_call.1} parent=1 // pred_region
      _
    $region29: #{tpu_custom_call.1} parent=1 // pred_fallthru
      _
    // Predicated region
    $region30: #{tpu_custom_call.1} parent=1 // pred_check
      _
    $region31: #{tpu_custom_call.1} parent=1 // pred_check_branch
      %73 = sbr.rel (0) target = $region33
    $region32: #{tpu_custom_call.1} parent=1 // pred_region
      %75 = dma.done [#allocation3], 1024
    $region33: #{tpu_custom_call.1} parent=1 // pred_fallthru
      _
    // Predicated region
    $region34: #{tpu_custom_call.1} parent=1 // pred_check
      _
    $region35: #{tpu_custom_call.1} parent=1 // pred_check_branch
      %77 = sbr.rel (0) target = $region37
    $region36: #{tpu_custom_call.1} parent=1 // pred_region
      %79 = dma.done [#allocation6], 8192
    $region37: #{tpu_custom_call.1} parent=1 // pred_fallthru
      _
    // Predicated region
    $region38: #{tpu_custom_call.1} parent=1 // pred_check
      _
    $region39: #{tpu_custom_call.1} parent=1 // pred_check_branch
      %81 = sbr.rel (0) target = $region41
    $region40: #{tpu_custom_call.1} parent=1 // pred_region
      %83 = dma.done [#allocation6], 1024
    $region41: #{tpu_custom_call.1} parent=1 // pred_fallthru
      _
    // Predicated region
    $region42: #{tpu_custom_call.1} parent=1 // pred_check
      _
    $region43: #{tpu_custom_call.1} parent=1 // pred_check_branch
      %85 = sbr.rel (0) target = $region45
    $region44: #{tpu_custom_call.1} parent=1 // pred_region
      %87 = dma.done [#allocation9], 1024
    $region45: #{tpu_custom_call.1} parent=1 // pred_fallthru
      _
    %v88 = vld [vmem:[#allocation2] sm:$0xff]
    %v89 = vld [vmem:[#allocation2 + $0x8] sm:$0xff]
    %v90 = vld [vmem:[#allocation2 + $0x10] sm:$0xff]
    %v91 = vld [vmem:[#allocation2 + $0x18] sm:$0xff]
    %v92 = vld [vmem:[#allocation2 + $0x20] sm:$0xff]
    %v93 = vld [vmem:[#allocation2 + $0x28] sm:$0xff]
    %v94 = vld [vmem:[#allocation2 + $0x30] sm:$0xff]
    %v95 = vld [vmem:[#allocation2 + $0x38] sm:$0xff]
    %v96 = vpack.c.bf16 %v88, %v88
    %v97 = vpack.c.bf16 %v89, %v89
    %v98 = vpack.c.bf16 %v90, %v90
    %v99 = vpack.c.bf16 %v91, %v91
    %v100 = vpack.c.bf16 %v92, %v92
    %v101 = vpack.c.bf16 %v93, %v93
    %v102 = vpack.c.bf16 %v94, %v94
    %v103 = vpack.c.bf16 %v95, %v95
    %v104 = vld [vmem:[#allocation5] sm:$0xf]
    %v105 = vld [vmem:[#allocation5 + $0x4] sm:$0xf]
    %v106 = vld [vmem:[#allocation5 + $0x8] sm:$0xf]
    %v107 = vld [vmem:[#allocation5 + $0xc] sm:$0xf]
    %v108 = vld [vmem:[#allocation5 + $0x10] sm:$0xf]
    %v109 = vld [vmem:[#allocation5 + $0x14] sm:$0xf]
    %v110 = vld [vmem:[#allocation5 + $0x18] sm:$0xf]
    %v111 = vld [vmem:[#allocation5 + $0x1c] sm:$0xf]
    %v112 = vld [vmem:[#allocation5 + $0x20] sm:$0xf]
    %v113 = vld [vmem:[#allocation5 + $0x24] sm:$0xf]
    %v114 = vld [vmem:[#allocation5 + $0x28] sm:$0xf]
    %v115 = vld [vmem:[#allocation5 + $0x2c] sm:$0xf]
    %v116 = vld [vmem:[#allocation5 + $0x30] sm:$0xf]
    %v117 = vld [vmem:[#allocation5 + $0x34] sm:$0xf]
    %v118 = vld [vmem:[#allocation5 + $0x38] sm:$0xf]
    %v119 = vld [vmem:[#allocation5 + $0x3c] sm:$0xf]
    %v120 = vld [vmem:[#allocation5 + $0x40] sm:$0xf]
    %v121 = vld [vmem:[#allocation5 + $0x44] sm:$0xf]
    %v122 = vld [vmem:[#allocation5 + $0x48] sm:$0xf]
    %v123 = vld [vmem:[#allocation5 + $0x4c] sm:$0xf]
    %v124 = vld [vmem:[#allocation5 + $0x50] sm:$0xf]
    %v125 = vld [vmem:[#allocation5 + $0x54] sm:$0xf]
    %v126 = vld [vmem:[#allocation5 + $0x58] sm:$0xf]
    %v127 = vld [vmem:[#allocation5 + $0x5c] sm:$0xf]
    %v128 = vld [vmem:[#allocation5 + $0x60] sm:$0xf]
    %v129 = vld [vmem:[#allocation5 + $0x64] sm:$0xf]
    %v130 = vld [vmem:[#allocation5 + $0x68] sm:$0xf]
    %v131 = vld [vmem:[#allocation5 + $0x6c] sm:$0xf]
    %v132 = vld [vmem:[#allocation5 + $0x70] sm:$0xf]
    %v133 = vld [vmem:[#allocation5 + $0x74] sm:$0xf]
    %v134 = vld [vmem:[#allocation5 + $0x78] sm:$0xf]
    %v135 = vld [vmem:[#allocation5 + $0x7c] sm:$0xf]
    %v136 = vld [vmem:[#allocation5 + $0x80] sm:$0xf]
    %v137 = vld [vmem:[#allocation5 + $0x84] sm:$0xf]
    %v138 = vld [vmem:[#allocation5 + $0x88] sm:$0xf]
    %v139 = vld [vmem:[#allocation5 + $0x8c] sm:$0xf]
    %v140 = vld [vmem:[#allocation5 + $0x90] sm:$0xf]
    %v141 = vld [vmem:[#allocation5 + $0x94] sm:$0xf]
    %v142 = vld [vmem:[#allocation5 + $0x98] sm:$0xf]
    %v143 = vld [vmem:[#allocation5 + $0x9c] sm:$0xf]
    %v144 = vld [vmem:[#allocation5 + $0xa0] sm:$0xf]
    %v145 = vld [vmem:[#allocation5 + $0xa4] sm:$0xf]
    %v146 = vld [vmem:[#allocation5 + $0xa8] sm:$0xf]
    %v147 = vld [vmem:[#allocation5 + $0xac] sm:$0xf]
    %v148 = vld [vmem:[#allocation5 + $0xb0] sm:$0xf]
    %v149 = vld [vmem:[#allocation5 + $0xb4] sm:$0xf]
    %v150 = vld [vmem:[#allocation5 + $0xb8] sm:$0xf]
    %v151 = vld [vmem:[#allocation5 + $0xbc] sm:$0xf]
    %v152 = vld [vmem:[#allocation5 + $0xc0] sm:$0xf]
    %v153 = vld [vmem:[#allocation5 + $0xc4] sm:$0xf]
    %v154 = vld [vmem:[#allocation5 + $0xc8] sm:$0xf]
    %v155 = vld [vmem:[#allocation5 + $0xcc] sm:$0xf]
    %v156 = vld [vmem:[#allocation5 + $0xd0] sm:$0xf]
    %v157 = vld [vmem:[#allocation5 + $0xd4] sm:$0xf]
    %v158 = vld [vmem:[#allocation5 + $0xd8] sm:$0xf]
    %v159 = vld [vmem:[#allocation5 + $0xdc] sm:$0xf]
    %v160 = vld [vmem:[#allocation5 + $0xe0] sm:$0xf]
    %v161 = vld [vmem:[#allocation5 + $0xe4] sm:$0xf]
    %v162 = vld [vmem:[#allocation5 + $0xe8] sm:$0xf]
    %v163 = vld [vmem:[#allocation5 + $0xec] sm:$0xf]
    %v164 = vld [vmem:[#allocation5 + $0xf0] sm:$0xf]
    %v165 = vld [vmem:[#allocation5 + $0xf4] sm:$0xf]
    %v166 = vld [vmem:[#allocation5 + $0xf8] sm:$0xf]
    %v167 = vld [vmem:[#allocation5 + $0xfc] sm:$0xf]
    %v168 = vld [vmem:[#allocation5 + $0x100] sm:$0xf]
    %v169 = vld [vmem:[#allocation5 + $0x104] sm:$0xf]
    %v170 = vld [vmem:[#allocation5 + $0x108] sm:$0xf]
    %v171 = vld [vmem:[#allocation5 + $0x10c] sm:$0xf]
    %v172 = vld [vmem:[#allocation5 + $0x110] sm:$0xf]
    %v173 = vld [vmem:[#allocation5 + $0x114] sm:$0xf]
    %v174 = vld [vmem:[#allocation5 + $0x118] sm:$0xf]
    %v175 = vld [vmem:[#allocation5 + $0x11c] sm:$0xf]
    %v176 = vld [vmem:[#allocation5 + $0x120] sm:$0xf]
    %v177 = vld [vmem:[#allocation5 + $0x124] sm:$0xf]
    %v178 = vld [vmem:[#allocation5 + $0x128] sm:$0xf]
    %v179 = vld [vmem:[#allocation5 + $0x12c] sm:$0xf]
    %v180 = vld [vmem:[#allocation5 + $0x130] sm:$0xf]
    %v181 = vld [vmem:[#allocation5 + $0x134] sm:$0xf]
    %v182 = vld [vmem:[#allocation5 + $0x138] sm:$0xf]
    %v183 = vld [vmem:[#allocation5 + $0x13c] sm:$0xf]
    %v184 = vld [vmem:[#allocation5 + $0x140] sm:$0xf]
    %v185 = vld [vmem:[#allocation5 + $0x144] sm:$0xf]
    %v186 = vld [vmem:[#allocation5 + $0x148] sm:$0xf]
    %v187 = vld [vmem:[#allocation5 + $0x14c] sm:$0xf]
    %v188 = vld [vmem:[#allocation5 + $0x150] sm:$0xf]
    %v189 = vld [vmem:[#allocation5 + $0x154] sm:$0xf]
    %v190 = vld [vmem:[#allocation5 + $0x158] sm:$0xf]
    %v191 = vld [vmem:[#allocation5 + $0x15c] sm:$0xf]
    %v192 = vld [vmem:[#allocation5 + $0x160] sm:$0xf]
    %v193 = vld [vmem:[#allocation5 + $0x164] sm:$0xf]
    %v194 = vld [vmem:[#allocation5 + $0x168] sm:$0xf]
    %v195 = vld [vmem:[#allocation5 + $0x16c] sm:$0xf]
    %v196 = vld [vmem:[#allocation5 + $0x170] sm:$0xf]
    %v197 = vld [vmem:[#allocation5 + $0x174] sm:$0xf]
    %v198 = vld [vmem:[#allocation5 + $0x178] sm:$0xf]
    %v199 = vld [vmem:[#allocation5 + $0x17c] sm:$0xf]
    %v200 = vld [vmem:[#allocation5 + $0x180] sm:$0xf]
    %v201 = vld [vmem:[#allocation5 + $0x184] sm:$0xf]
    %v202 = vld [vmem:[#allocation5 + $0x188] sm:$0xf]
    %v203 = vld [vmem:[#allocation5 + $0x18c] sm:$0xf]
    %v204 = vld [vmem:[#allocation5 + $0x190] sm:$0xf]
    %v205 = vld [vmem:[#allocation5 + $0x194] sm:$0xf]
    %v206 = vld [vmem:[#allocation5 + $0x198] sm:$0xf]
    %v207 = vld [vmem:[#allocation5 + $0x19c] sm:$0xf]
    %v208 = vld [vmem:[#allocation5 + $0x1a0] sm:$0xf]
    %v209 = vld [vmem:[#allocation5 + $0x1a4] sm:$0xf]
    %v210 = vld [vmem:[#allocation5 + $0x1a8] sm:$0xf]
    %v211 = vld [vmem:[#allocation5 + $0x1ac] sm:$0xf]
    %v212 = vld [vmem:[#allocation5 + $0x1b0] sm:$0xf]
    %v213 = vld [vmem:[#allocation5 + $0x1b4] sm:$0xf]
    %v214 = vld [vmem:[#allocation5 + $0x1b8] sm:$0xf]
    %v215 = vld [vmem:[#allocation5 + $0x1bc] sm:$0xf]
    %v216 = vld [vmem:[#allocation5 + $0x1c0] sm:$0xf]
    %v217 = vld [vmem:[#allocation5 + $0x1c4] sm:$0xf]
    %v218 = vld [vmem:[#allocation5 + $0x1c8] sm:$0xf]
    %v219 = vld [vmem:[#allocation5 + $0x1cc] sm:$0xf]
    %v220 = vld [vmem:[#allocation5 + $0x1d0] sm:$0xf]
    %v221 = vld [vmem:[#allocation5 + $0x1d4] sm:$0xf]
    %v222 = vld [vmem:[#allocation5 + $0x1d8] sm:$0xf]
    %v223 = vld [vmem:[#allocation5 + $0x1dc] sm:$0xf]
    %v224 = vld [vmem:[#allocation5 + $0x1e0] sm:$0xf]
    %v225 = vld [vmem:[#allocation5 + $0x1e4] sm:$0xf]
    %v226 = vld [vmem:[#allocation5 + $0x1e8] sm:$0xf]
    %v227 = vld [vmem:[#allocation5 + $0x1ec] sm:$0xf]
    %v228 = vld [vmem:[#allocation5 + $0x1f0] sm:$0xf]
    %v229 = vld [vmem:[#allocation5 + $0x1f4] sm:$0xf]
    %v230 = vld [vmem:[#allocation5 + $0x1f8] sm:$0xf]
    %v231 = vld [vmem:[#allocation5 + $0x1fc] sm:$0xf]
    %v232 = vld [vmem:[%s2] sm:$0x1]
    %v234 = vperm.slane %v232, 0
    %v364 = vunpack.c.l.b16 %v104
    %v365 = vunpack.c.l.b16 %v105
    %v366 = vunpack.c.l.b16 %v106
    %v367 = vunpack.c.l.b16 %v107
    %v368 = vunpack.c.l.b16 %v108
    %v369 = vunpack.c.l.b16 %v109
    %v370 = vunpack.c.l.b16 %v110
    %v371 = vunpack.c.l.b16 %v111
    %v372 = vunpack.c.l.b16 %v112
    %v373 = vunpack.c.l.b16 %v113
    %v374 = vunpack.c.l.b16 %v114
    %v375 = vunpack.c.l.b16 %v115
    %v376 = vunpack.c.l.b16 %v116
    %v377 = vunpack.c.l.b16 %v117
    %v378 = vunpack.c.l.b16 %v118
    %v379 = vunpack.c.l.b16 %v119
    %v380 = vunpack.c.l.b16 %v120
    %v381 = vunpack.c.l.b16 %v121
    %v382 = vunpack.c.l.b16 %v122
    %v383 = vunpack.c.l.b16 %v123
    %v384 = vunpack.c.l.b16 %v124
    %v385 = vunpack.c.l.b16 %v125
    %v386 = vunpack.c.l.b16 %v126
    %v387 = vunpack.c.l.b16 %v127
    %v388 = vunpack.c.l.b16 %v128
    %v389 = vunpack.c.l.b16 %v129
    %v390 = vunpack.c.l.b16 %v130
    %v391 = vunpack.c.l.b16 %v131
    %v392 = vunpack.c.l.b16 %v132
    %v393 = vunpack.c.l.b16 %v133
    %v394 = vunpack.c.l.b16 %v134
    %v395 = vunpack.c.l.b16 %v135
    %v396 = vunpack.c.l.b16 %v136
    %v397 = vunpack.c.l.b16 %v137
    %v398 = vunpack.c.l.b16 %v138
    %v399 = vunpack.c.l.b16 %v139
    %v400 = vunpack.c.l.b16 %v140
    %v401 = vunpack.c.l.b16 %v141
    %v402 = vunpack.c.l.b16 %v142
    %v403 = vunpack.c.l.b16 %v143
    %v404 = vunpack.c.l.b16 %v144
    %v405 = vunpack.c.l.b16 %v145
    %v406 = vunpack.c.l.b16 %v146
    %v407 = vunpack.c.l.b16 %v147
    %v408 = vunpack.c.l.b16 %v148
    %v409 = vunpack.c.l.b16 %v149
    %v410 = vunpack.c.l.b16 %v150
    %v411 = vunpack.c.l.b16 %v151
    %v412 = vunpack.c.l.b16 %v152
    %v413 = vunpack.c.l.b16 %v153
    %v414 = vunpack.c.l.b16 %v154
    %v415 = vunpack.c.l.b16 %v155
    %v416 = vunpack.c.l.b16 %v156
    %v417 = vunpack.c.l.b16 %v157
    %v418 = vunpack.c.l.b16 %v158
    %v419 = vunpack.c.l.b16 %v159
    %v420 = vunpack.c.l.b16 %v160
    %v421 = vunpack.c.l.b16 %v161
    %v422 = vunpack.c.l.b16 %v162
    %v423 = vunpack.c.l.b16 %v163
    %v424 = vunpack.c.l.b16 %v164
    %v425 = vunpack.c.l.b16 %v165
    %v426 = vunpack.c.l.b16 %v166
    %v427 = vunpack.c.l.b16 %v167
    %v428 = vunpack.c.l.b16 %v168
    %v429 = vunpack.c.l.b16 %v169
    %v430 = vunpack.c.l.b16 %v170
    %v431 = vunpack.c.l.b16 %v171
    %v432 = vunpack.c.l.b16 %v172
    %v433 = vunpack.c.l.b16 %v173
    %v434 = vunpack.c.l.b16 %v174
    %v435 = vunpack.c.l.b16 %v175
    %v436 = vunpack.c.l.b16 %v176
    %v437 = vunpack.c.l.b16 %v177
    %v438 = vunpack.c.l.b16 %v178
    %v439 = vunpack.c.l.b16 %v179
    %v440 = vunpack.c.l.b16 %v180
    %v441 = vunpack.c.l.b16 %v181
    %v442 = vunpack.c.l.b16 %v182
    %v443 = vunpack.c.l.b16 %v183
    %v444 = vunpack.c.l.b16 %v184
    %v445 = vunpack.c.l.b16 %v185
    %v446 = vunpack.c.l.b16 %v186
    %v447 = vunpack.c.l.b16 %v187
    %v448 = vunpack.c.l.b16 %v188
    %v449 = vunpack.c.l.b16 %v189
    %v450 = vunpack.c.l.b16 %v190
    %v451 = vunpack.c.l.b16 %v191
    %v452 = vunpack.c.l.b16 %v192
    %v453 = vunpack.c.l.b16 %v193
    %v454 = vunpack.c.l.b16 %v194
    %v455 = vunpack.c.l.b16 %v195
    %v456 = vunpack.c.l.b16 %v196
    %v457 = vunpack.c.l.b16 %v197
    %v458 = vunpack.c.l.b16 %v198
    %v459 = vunpack.c.l.b16 %v199
    %v460 = vunpack.c.l.b16 %v200
    %v461 = vunpack.c.l.b16 %v201
    %v462 = vunpack.c.l.b16 %v202
    %v463 = vunpack.c.l.b16 %v203
    %v464 = vunpack.c.l.b16 %v204
    %v465 = vunpack.c.l.b16 %v205
    %v466 = vunpack.c.l.b16 %v206
    %v467 = vunpack.c.l.b16 %v207
    %v468 = vunpack.c.l.b16 %v208
    %v469 = vunpack.c.l.b16 %v209
    %v470 = vunpack.c.l.b16 %v210
    %v471 = vunpack.c.l.b16 %v211
    %v472 = vunpack.c.l.b16 %v212
    %v473 = vunpack.c.l.b16 %v213
    %v474 = vunpack.c.l.b16 %v214
    %v475 = vunpack.c.l.b16 %v215
    %v476 = vunpack.c.l.b16 %v216
    %v477 = vunpack.c.l.b16 %v217
    %v478 = vunpack.c.l.b16 %v218
    %v479 = vunpack.c.l.b16 %v219
    %v480 = vunpack.c.l.b16 %v220
    %v481 = vunpack.c.l.b16 %v221
    %v482 = vunpack.c.l.b16 %v222
    %v483 = vunpack.c.l.b16 %v223
    %v484 = vunpack.c.l.b16 %v224
    %v485 = vunpack.c.l.b16 %v225
    %v486 = vunpack.c.l.b16 %v226
    %v487 = vunpack.c.l.b16 %v227
    %v488 = vunpack.c.l.b16 %v228
    %v489 = vunpack.c.l.b16 %v229
    %v490 = vunpack.c.l.b16 %v230
    %v491 = vunpack.c.l.b16 %v231
    %v492 = vpack.c.b16 %v365, %v364
    %v493 = vpack.c.b16 %v367, %v366
    %v494 = vpack.c.b16 %v369, %v368
    %v495 = vpack.c.b16 %v371, %v370
    %v496 = vpack.c.b16 %v373, %v372
    %v497 = vpack.c.b16 %v375, %v374
    %v498 = vpack.c.b16 %v377, %v376
    %v499 = vpack.c.b16 %v379, %v378
    %v500 = vpack.c.b16 %v381, %v380
    %v501 = vpack.c.b16 %v383, %v382
    %v502 = vpack.c.b16 %v385, %v384
    %v503 = vpack.c.b16 %v387, %v386
    %v504 = vpack.c.b16 %v389, %v388
    %v505 = vpack.c.b16 %v391, %v390
    %v506 = vpack.c.b16 %v393, %v392
    %v507 = vpack.c.b16 %v395, %v394
    %v508 = vpack.c.b16 %v397, %v396
    %v509 = vpack.c.b16 %v399, %v398
    %v510 = vpack.c.b16 %v401, %v400
    %v511 = vpack.c.b16 %v403, %v402
    %v512 = vpack.c.b16 %v405, %v404
    %v513 = vpack.c.b16 %v407, %v406
    %v514 = vpack.c.b16 %v409, %v408
    %v515 = vpack.c.b16 %v411, %v410
    %v516 = vpack.c.b16 %v413, %v412
    %v517 = vpack.c.b16 %v415, %v414
    %v518 = vpack.c.b16 %v417, %v416
    %v519 = vpack.c.b16 %v419, %v418
    %v520 = vpack.c.b16 %v421, %v420
    %v521 = vpack.c.b16 %v423, %v422
    %v522 = vpack.c.b16 %v425, %v424
    %v523 = vpack.c.b16 %v427, %v426
    %v524 = vpack.c.b16 %v429, %v428
    %v525 = vpack.c.b16 %v431, %v430
    %v526 = vpack.c.b16 %v433, %v432
    %v527 = vpack.c.b16 %v435, %v434
    %v528 = vpack.c.b16 %v437, %v436
    %v529 = vpack.c.b16 %v439, %v438
    %v530 = vpack.c.b16 %v441, %v440
    %v531 = vpack.c.b16 %v443, %v442
    %v532 = vpack.c.b16 %v445, %v444
    %v533 = vpack.c.b16 %v447, %v446
    %v534 = vpack.c.b16 %v449, %v448
    %v535 = vpack.c.b16 %v451, %v450
    %v536 = vpack.c.b16 %v453, %v452
    %v537 = vpack.c.b16 %v455, %v454
    %v538 = vpack.c.b16 %v457, %v456
    %v539 = vpack.c.b16 %v459, %v458
    %v540 = vpack.c.b16 %v461, %v460
    %v541 = vpack.c.b16 %v463, %v462
    %v542 = vpack.c.b16 %v465, %v464
    %v543 = vpack.c.b16 %v467, %v466
    %v544 = vpack.c.b16 %v469, %v468
    %v545 = vpack.c.b16 %v471, %v470
    %v546 = vpack.c.b16 %v473, %v472
    %v547 = vpack.c.b16 %v475, %v474
    %v548 = vpack.c.b16 %v477, %v476
    %v549 = vpack.c.b16 %v479, %v478
    %v550 = vpack.c.b16 %v481, %v480
    %v551 = vpack.c.b16 %v483, %v482
    %v552 = vpack.c.b16 %v485, %v484
    %v553 = vpack.c.b16 %v487, %v486
    %v554 = vpack.c.b16 %v489, %v488
    %v555 = vpack.c.b16 %v491, %v490
    %620 = vmatpush.bf16.msra.mxu0 %v499
    %621 = vmatpush.bf16.msra.mxu0 %v498
    %622 = vmatpush.bf16.msra.mxu0 %v497
    %623 = vmatpush.bf16.msra.mxu0 %v496
    %624 = vmatpush.bf16.msra.mxu0 %v495
    %625 = vmatpush.bf16.msra.mxu0 %v494
    %626 = vmatpush.bf16.msra.mxu0 %v493
    %627 = vmatpush.bf16.msra.mxu0 %v492
    %628 = vmatmul.bf16.gmra.mxu0 %v96
    %v629 = vpop.f32.mrf.mxu0
    %v630 = vadd.f32 %v234, %v629
    %v631 = vpop.f32.mrf.mxu0
    %632 = vdwg.mxu0
    %633 = vmatpush.bf16.msra.mxu0 %v507
    %634 = vmatpush.bf16.msra.mxu0 %v506
    %635 = vmatpush.bf16.msra.mxu0 %v505
    %636 = vmatpush.bf16.msra.mxu0 %v504
    %637 = vmatpush.bf16.msra.mxu0 %v503
    %638 = vmatpush.bf16.msra.mxu0 %v502
    %639 = vmatpush.bf16.msra.mxu0 %v501
    %640 = vmatpush.bf16.msra.mxu0 %v500
    %641 = vmatmul.bf16.gmra.mxu0 %v97
    %v642 = vpop.f32.mrf.mxu0
    %v643 = vadd.f32 %v630, %v642
    %v644 = vpop.f32.mrf.mxu0
    %645 = vdwg.mxu0
    %646 = vmatpush.bf16.msra.mxu0 %v515
    %647 = vmatpush.bf16.msra.mxu0 %v514
    %648 = vmatpush.bf16.msra.mxu0 %v513
    %649 = vmatpush.bf16.msra.mxu0 %v512
    %650 = vmatpush.bf16.msra.mxu0 %v511
    %651 = vmatpush.bf16.msra.mxu0 %v510
    %652 = vmatpush.bf16.msra.mxu0 %v509
    %653 = vmatpush.bf16.msra.mxu0 %v508
    %654 = vmatmul.bf16.gmra.mxu0 %v98
    %v655 = vpop.f32.mrf.mxu0
    %v656 = vadd.f32 %v643, %v655
    %v657 = vpop.f32.mrf.mxu0
    %658 = vdwg.mxu0
    %659 = vmatpush.bf16.msra.mxu0 %v523
    %660 = vmatpush.bf16.msra.mxu0 %v522
    %661 = vmatpush.bf16.msra.mxu0 %v521
    %662 = vmatpush.bf16.msra.mxu0 %v520
    %663 = vmatpush.bf16.msra.mxu0 %v519
    %664 = vmatpush.bf16.msra.mxu0 %v518
    %665 = vmatpush.bf16.msra.mxu0 %v517
    %666 = vmatpush.bf16.msra.mxu0 %v516
    %667 = vmatmul.bf16.gmra.mxu0 %v99
    %v668 = vpop.f32.mrf.mxu0
    %v669 = vadd.f32 %v656, %v668
    %v670 = vpop.f32.mrf.mxu0
    %671 = vdwg.mxu0
    %672 = vmatpush.bf16.msra.mxu0 %v531
    %673 = vmatpush.bf16.msra.mxu0 %v530
    %674 = vmatpush.bf16.msra.mxu0 %v529
    %675 = vmatpush.bf16.msra.mxu0 %v528
    %676 = vmatpush.bf16.msra.mxu0 %v527
    %677 = vmatpush.bf16.msra.mxu0 %v526
    %678 = vmatpush.bf16.msra.mxu0 %v525
    %679 = vmatpush.bf16.msra.mxu0 %v524
    %680 = vmatmul.bf16.gmra.mxu0 %v100
    %v681 = vpop.f32.mrf.mxu0
    %v682 = vadd.f32 %v669, %v681
    %v683 = vpop.f32.mrf.mxu0
    %684 = vdwg.mxu0
    %685 = vmatpush.bf16.msra.mxu0 %v539
    %686 = vmatpush.bf16.msra.mxu0 %v538
    %687 = vmatpush.bf16.msra.mxu0 %v537
    %688 = vmatpush.bf16.msra.mxu0 %v536
    %689 = vmatpush.bf16.msra.mxu0 %v535
    %690 = vmatpush.bf16.msra.mxu0 %v534
    %691 = vmatpush.bf16.msra.mxu0 %v533
    %692 = vmatpush.bf16.msra.mxu0 %v532
    %693 = vmatmul.bf16.gmra.mxu0 %v101
    %v694 = vpop.f32.mrf.mxu0
    %v695 = vadd.f32 %v682, %v694
    %v696 = vpop.f32.mrf.mxu0
    %697 = vdwg.mxu0
    %698 = vmatpush.bf16.msra.mxu0 %v547
    %699 = vmatpush.bf16.msra.mxu0 %v546
    %700 = vmatpush.bf16.msra.mxu0 %v545
    %701 = vmatpush.bf16.msra.mxu0 %v544
    %702 = vmatpush.bf16.msra.mxu0 %v543
    %703 = vmatpush.bf16.msra.mxu0 %v542
    %704 = vmatpush.bf16.msra.mxu0 %v541
    %705 = vmatpush.bf16.msra.mxu0 %v540
    %706 = vmatmul.bf16.gmra.mxu0 %v102
    %v707 = vpop.f32.mrf.mxu0
    %v708 = vadd.f32 %v695, %v707
    %v709 = vpop.f32.mrf.mxu0
    %710 = vdwg.mxu0
    %711 = vmatpush.bf16.msra.mxu0 %v555
    %712 = vmatpush.bf16.msra.mxu0 %v554
    %713 = vmatpush.bf16.msra.mxu0 %v553
    %714 = vmatpush.bf16.msra.mxu0 %v552
    %715 = vmatpush.bf16.msra.mxu0 %v551
    %716 = vmatpush.bf16.msra.mxu0 %v550
    %717 = vmatpush.bf16.msra.mxu0 %v549
    %718 = vmatpush.bf16.msra.mxu0 %v548
    %719 = vmatmul.bf16.gmra.mxu0 %v103
    %v720 = vpop.f32.mrf.mxu0
    %v721 = vadd.f32 %v708, %v720
    %v722 = vpop.f32.mrf.mxu0
    %723 = vdwg.mxu0
    %v724 = vmax.f32 %v721, 0.0
    %v725 = vpack.c.bf16 %v724, %v724
    %v726 = vld [vmem:[#allocation7] sm:$0xf]
    %v727 = vld [vmem:[#allocation7 + $0x4] sm:$0xf]
    %v728 = vld [vmem:[#allocation7 + $0x8] sm:$0xf]
    %v729 = vld [vmem:[#allocation7 + $0xc] sm:$0xf]
    %v730 = vld [vmem:[#allocation7 + $0x10] sm:$0xf]
    %v731 = vld [vmem:[#allocation7 + $0x14] sm:$0xf]
    %v732 = vld [vmem:[#allocation7 + $0x18] sm:$0xf]
    %v733 = vld [vmem:[#allocation7 + $0x1c] sm:$0xf]
    %v734 = vld [vmem:[#allocation7 + $0x20] sm:$0xf]
    %v735 = vld [vmem:[#allocation7 + $0x24] sm:$0xf]
    %v736 = vld [vmem:[#allocation7 + $0x28] sm:$0xf]
    %v737 = vld [vmem:[#allocation7 + $0x2c] sm:$0xf]
    %v738 = vld [vmem:[#allocation7 + $0x30] sm:$0xf]
    %v739 = vld [vmem:[#allocation7 + $0x34] sm:$0xf]
    %v740 = vld [vmem:[#allocation7 + $0x38] sm:$0xf]
    %v741 = vld [vmem:[#allocation7 + $0x3c] sm:$0xf]
    %v742 = vld [vmem:[%s4] sm:$0x1]
    %v744 = vperm.slane %v742, 0
    %v762 = vunpack.c.l.b16 %v726
    %v763 = vunpack.c.l.b16 %v727
    %v764 = vunpack.c.l.b16 %v728
    %v765 = vunpack.c.l.b16 %v729
    %v766 = vunpack.c.l.b16 %v730
    %v767 = vunpack.c.l.b16 %v731
    %v768 = vunpack.c.l.b16 %v732
    %v769 = vunpack.c.l.b16 %v733
    %v770 = vunpack.c.l.b16 %v734
    %v771 = vunpack.c.l.b16 %v735
    %v772 = vunpack.c.l.b16 %v736
    %v773 = vunpack.c.l.b16 %v737
    %v774 = vunpack.c.l.b16 %v738
    %v775 = vunpack.c.l.b16 %v739
    %v776 = vunpack.c.l.b16 %v740
    %v777 = vunpack.c.l.b16 %v741
    %v778 = vpack.c.b16 %v763, %v762
    %v779 = vpack.c.b16 %v765, %v764
    %v780 = vpack.c.b16 %v767, %v766
    %v781 = vpack.c.b16 %v769, %v768
    %v782 = vpack.c.b16 %v771, %v770
    %v783 = vpack.c.b16 %v773, %v772
    %v784 = vpack.c.b16 %v775, %v774
    %v785 = vpack.c.b16 %v777, %v776
    %794 = vmatpush.bf16.msra.mxu0 %v785
    %795 = vmatpush.bf16.msra.mxu0 %v784
    %796 = vmatpush.bf16.msra.mxu0 %v783
    %797 = vmatpush.bf16.msra.mxu0 %v782
    %798 = vmatpush.bf16.msra.mxu0 %v781
    %799 = vmatpush.bf16.msra.mxu0 %v780
    %800 = vmatpush.bf16.msra.mxu0 %v779
    %801 = vmatpush.bf16.msra.mxu0 %v778
    %802 = vmatmul.bf16.gmra.mxu0 %v725
    %v803 = vpop.f32.mrf.mxu0
    %v804 = vadd.f32 %v744, %v803
    %v805 = vpop.f32.mrf.mxu0
    %806 = vdwg.mxu0
    %v807 = vxor.u32 %v804, 2147483648
    %v808 = vmul.f32 %v807, 1.442695
    %v809 = vpow.pop %v808
    %v810 = vadd.f32 %v809, 1.0
    %v811 = vrcp.pop %v810
    %v812 = vmul.f32 %v810, %v811
    %v813 = vsub.f32 1.0, %v812
    %v814 = vmul.f32 %v811, %v813
    %v815 = vadd.f32 %v811, %v814
    %vm816 = vweird.f32 %v810
    %vm817 = vweird.f32 %v811
    %vm818 = vmor %vm816, %vm817
    %v819 = vsel %vm818, %v811, %v815
    %v820 = vand.u32 2147483647, %v810
    %vm821 = vcmp.eq.f32.partialorder %v820, 8.507059e+37
    %v822 = vand.u32 %v810, 2147483648
    %v823 = vor.u32 1.1754944e-38, %v822
    %v824 = vsel %vm821, %v823, %v819
    %v825 = vmul.f32 1.0, %v824
    %v826 = vpack.c.bf16 %v825, %v825
    %v827 = vld [vmem:[#allocation8] sm:$0xf]
    %v828 = vld [vmem:[#allocation8 + $0x4] sm:$0xf]
    %v829 = vld [vmem:[#allocation8 + $0x8] sm:$0xf]
    %v830 = vld [vmem:[#allocation8 + $0xc] sm:$0xf]
    %v831 = vld [vmem:[#allocation8 + $0x10] sm:$0xf]
    %v832 = vld [vmem:[#allocation8 + $0x14] sm:$0xf]
    %v833 = vld [vmem:[#allocation8 + $0x18] sm:$0xf]
    %v834 = vld [vmem:[#allocation8 + $0x1c] sm:$0xf]
    %v835 = vld [vmem:[#allocation8 + $0x20] sm:$0xf]
    %v836 = vld [vmem:[#allocation8 + $0x24] sm:$0xf]
    %v837 = vld [vmem:[#allocation8 + $0x28] sm:$0xf]
    %v838 = vld [vmem:[#allocation8 + $0x2c] sm:$0xf]
    %v839 = vld [vmem:[#allocation8 + $0x30] sm:$0xf]
    %v840 = vld [vmem:[#allocation8 + $0x34] sm:$0xf]
    %v841 = vld [vmem:[#allocation8 + $0x38] sm:$0xf]
    %v842 = vld [vmem:[#allocation8 + $0x3c] sm:$0xf]
    %v843 = vld [vmem:[%s6] sm:$0x1]
    %v845 = vperm.slane %v843, 0
    %v863 = vunpack.c.l.b16 %v827
    %v864 = vunpack.c.l.b16 %v828
    %v865 = vunpack.c.l.b16 %v829
    %v866 = vunpack.c.l.b16 %v830
    %v867 = vunpack.c.l.b16 %v831
    %v868 = vunpack.c.l.b16 %v832
    %v869 = vunpack.c.l.b16 %v833
    %v870 = vunpack.c.l.b16 %v834
    %v871 = vunpack.c.l.b16 %v835
    %v872 = vunpack.c.l.b16 %v836
    %v873 = vunpack.c.l.b16 %v837
    %v874 = vunpack.c.l.b16 %v838
    %v875 = vunpack.c.l.b16 %v839
    %v876 = vunpack.c.l.b16 %v840
    %v877 = vunpack.c.l.b16 %v841
    %v878 = vunpack.c.l.b16 %v842
    %v879 = vpack.c.b16 %v864, %v863
    %v880 = vpack.c.b16 %v866, %v865
    %v881 = vpack.c.b16 %v868, %v867
    %v882 = vpack.c.b16 %v870, %v869
    %v883 = vpack.c.b16 %v872, %v871
    %v884 = vpack.c.b16 %v874, %v873
    %v885 = vpack.c.b16 %v876, %v875
    %v886 = vpack.c.b16 %v878, %v877
    %895 = vmatpush.bf16.msra.mxu0 %v886
    %896 = vmatpush.bf16.msra.mxu0 %v885
    %897 = vmatpush.bf16.msra.mxu0 %v884
    %898 = vmatpush.bf16.msra.mxu0 %v883
    %899 = vmatpush.bf16.msra.mxu0 %v882
    %900 = vmatpush.bf16.msra.mxu0 %v881
    %901 = vmatpush.bf16.msra.mxu0 %v880
    %902 = vmatpush.bf16.msra.mxu0 %v879
    %903 = vmatmul.bf16.gmra.mxu0 %v826
    %v904 = vpop.f32.mrf.mxu0
    %v905 = vadd.f32 %v845, %v904
    %v906 = vpop.f32.mrf.mxu0
    %907 = vdwg.mxu0
    %908 = vst [vmem:[#allocation10] sm:$0xff] %v905
    // Predicated region
    $region46: #{tpu_custom_call.1} parent=1 // pred_check
      _
    $region47: #{tpu_custom_call.1} parent=1 // pred_check_branch
      %910 = sbr.rel (0) target = $region49
    $region48: #{tpu_custom_call.1} parent=1 // pred_region
      %912 = vsyncadd [#allocation4], 0
      %s914 = sshll.u32 [#allocation10], 4
      %s915 = int_to_ptr.vmem [resolvable:$true] %s914
      %s916 = sshll.u32 %s7, 4
      %s917 = int_to_ptr.hbm [resolvable:$true] %s916
      %919 = dma.vmem_to_hbm [thread:$0]  %s915, 128, %s917, [#allocation4]
    $region49: #{tpu_custom_call.1} parent=1 // pred_fallthru
      _
    // Predicated region
    $region50: #{tpu_custom_call.1} parent=1 // pred_check
      _
    $region51: #{tpu_custom_call.1} parent=1 // pred_check_branch
      %921 = sbr.rel (0) target = $region53
    $region52: #{tpu_custom_call.1} parent=1 // pred_region
      %923 = dma.done [#allocation4], 128
    $region53: #{tpu_custom_call.1} parent=1 // pred_fallthru
      _
    %924 = vsyncpa [#allocation3], 1
    %925 = vsyncpa [#allocation6], 1
    %926 = vsyncpa [#allocation9], 1
    %927 = vsyncpa [#allocation4], 1

// kernel: tpu_custom_call.1
$region0: #{tpu_custom_call.1}
  #allocation0 [shape = 'u32[]', space=smem, size = 0x4, offset = 0x4, fixed_abs, tag = 'smem constant byte address 0x4 - core index']
  #allocation1 [shape = 'u32[72,128]{1,0:T(1,128)}', space=vmem, size = 0x9000, scoped, tag = 'internal scratch']
  %s0 = inlined_call_operand.hbm [shape: f32[8,1024], index: 0, kind: input, shape index: {}]
  %s1 = inlined_call_operand.hbm [shape: bf16[1024,128], index: 1, kind: input, shape index: {}]
  %s2 = inlined_call_operand.vmem [shape: f32[1,128], index: 2, kind: input, shape index: {}]
  %s3 = inlined_call_operand.hbm [shape: bf16[128,128], index: 3, kind: input, shape index: {}]
  %s4 = inlined_call_operand.vmem [shape: f32[1,128], index: 4, kind: input, shape index: {}]
  %s5 = inlined_call_operand.hbm [shape: bf16[128,128], index: 5, kind: input, shape index: {}]
  %s6 = inlined_call_operand.vmem [shape: f32[1,128], index: 6, kind: input, shape index: {}]
  %s7 = inlined_call_operand.hbm [shape: f32[8,128], index: 7, kind: output, shape index: {}]
  %s8 = sld [smem:[#allocation0]]
  $region54: #{tpu_custom_call.1} parent=0
    _
  %s10 = ssub.s32 1, %s8
  %s11 = scalar_select 0, %s10, %s8
  $region1: #{tpu_custom_call.1} parent=0
    #allocation2 [shape = 'u8[32768]{0}', space=vmem, size = 0x8000, scoped, tag = 'input window, operand 0, single buffered']
    #allocation3 [shape = 's32[1]{0}', space=sflag, size = 0x4, scoped, tag = 'scoped memory for tpu_custom_call.1']
    #allocation4 [shape = 's32[1]{0}', space=sflag, size = 0x4, scoped, tag = 'scoped memory for tpu_custom_call.1']
    #allocation5 [shape = 'u8[262144]{0}', space=vmem, size = 0x40000, scoped, tag = 'input window, operand 1, single buffered']
    #allocation6 [shape = 's32[1]{0}', space=sflag, size = 0x4, scoped, tag = 'scoped memory for tpu_custom_call.1']
    #allocation7 [shape = 'u8[32768]{0}', space=vmem, size = 0x8000, scoped, tag = 'input window, operand 3, single buffered']
    #allocation8 [shape = 'u8[32768]{0}', space=vmem, size = 0x8000, scoped, tag = 'input window, operand 5, single buffered']
    #allocation9 [shape = 's32[1]{0}', space=sflag, size = 0x4, scoped, tag = 'scoped memory for tpu_custom_call.1']
    #allocation10 [shape = 'u8[4096]{0}', space=vmem, size = 0x1000, scoped, tag = 'output window, operand 0, single buffered']
    %12 = vsyncpa [#allocation3], 0
    %13 = vsyncpa [#allocation6], 0
    %14 = vsyncpa [#allocation9], 0
    %15 = vsyncpa [#allocation4], 0
    // Predicated region
    $region2: #{tpu_custom_call.1} parent=1 // pred_check
      _
    $region3: #{tpu_custom_call.1} parent=1 // pred_check_branch
      %17 = sbr.rel (0) target = $region5
    $region4: #{tpu_custom_call.1} parent=1 // pred_region
      %19 = vsyncadd [#allocation3], 0
      %s21 = sshll.u32 %s0, 4
      %s22 = int_to_ptr.hbm [resolvable:$true] %s21
      %s23 = sshll.u32 [#allocation2], 4
      %s24 = int_to_ptr.vmem [resolvable:$true] %s23
      %26 = dma.hbm_to_vmem [thread:$0]  %s22, 1024, %s24, [#allocation3]
    $region5: #{tpu_custom_call.1} parent=1 // pred_fallthru
      _
    // Predicated region
    $region6: #{tpu_custom_call.1} parent=1 // pred_check
      _
    $region7: #{tpu_custom_call.1} parent=1 // pred_check_branch
      %28 = sbr.rel (0) target = $region9
    $region8: #{tpu_custom_call.1} parent=1 // pred_region
      %30 = vsyncadd [#allocation6], 0
      %s31 = sshll.u32 %s1, 4
      %s32 = int_to_ptr.hbm [resolvable:$true] %s31
      %s33 = sshll.u32 [#allocation5], 4
      %s34 = int_to_ptr.vmem [resolvable:$true] %s33
      %39 = dma.hbm_to_vmem [thread:$0]  %s32, 8192, %s34, [#allocation6], 64, 64, 4
    $region9: #{tpu_custom_call.1} parent=1 // pred_fallthru
      _
    // Predicated region
    $region10: #{tpu_custom_call.1} parent=1 // pred_check
      _
    $region11: #{tpu_custom_call.1} parent=1 // pred_check_branch
      %41 = sbr.rel (0) target = $region13
    $region12: #{tpu_custom_call.1} parent=1 // pred_region
      _
    $region13: #{tpu_custom_call.1} parent=1 // pred_fallthru
      _
    // Predicated region
    $region14: #{tpu_custom_call.1} parent=1 // pred_check
      _
    $region15: #{tpu_custom_call.1} parent=1 // pred_check_branch
      %43 = sbr.rel (0) target = $region17
    $region16: #{tpu_custom_call.1} parent=1 // pred_region
      %45 = vsyncadd [#allocation6], 0
      %s46 = sshll.u32 %s3, 4
      %s47 = int_to_ptr.hbm [resolvable:$true] %s46
      %s48 = sshll.u32 [#allocation7], 4
      %s49 = int_to_ptr.vmem [resolvable:$true] %s48
      %54 = dma.hbm_to_vmem [thread:$0]  %s47, 1024, %s49, [#allocation6], 64, 64, 4
    $region17: #{tpu_custom_call.1} parent=1 // pred_fallthru
      _
    // Predicated region
    $region18: #{tpu_custom_call.1} parent=1 // pred_check
      _
    $region19: #{tpu_custom_call.1} parent=1 // pred_check_branch
      %56 = sbr.rel (0) target = $region21
    $region20: #{tpu_custom_call.1} parent=1 // pred_region
      _
    $region21: #{tpu_custom_call.1} parent=1 // pred_fallthru
      _
    // Predicated region
    $region22: #{tpu_custom_call.1} parent=1 // pred_check
      _
    $region23: #{tpu_custom_call.1} parent=1 // pred_check_branch
      %58 = sbr.rel (0) target = $region25
    $region24: #{tpu_custom_call.1} parent=1 // pred_region
      %60 = vsyncadd [#allocation9], 0
      %s61 = sshll.u32 %s5, 4
      %s62 = int_to_ptr.hbm [resolvable:$true] %s61
      %s63 = sshll.u32 [#allocation8], 4
      %s64 = int_to_ptr.vmem [resolvable:$true] %s63
      %69 = dma.hbm_to_vmem [thread:$0]  %s62, 1024, %s64, [#allocation9], 64, 64, 4
    $region25: #{tpu_custom_call.1} parent=1 // pred_fallthru
      _
    // Predicated region
    $region26: #{tpu_custom_call.1} parent=1 // pred_check
      _
    $region27: #{tpu_custom_call.1} parent=1 // pred_check_branch
      %71 = sbr.rel (0) target = $region29
    $region28: #{tpu_custom_call.1} parent=1 // pred_region
      _
    $region29: #{tpu_custom_call.1} parent=1 // pred_fallthru
      _
    // Predicated region
    $region30: #{tpu_custom_call.1} parent=1 // pred_check
      _
    $region31: #{tpu_custom_call.1} parent=1 // pred_check_branch
      %73 = sbr.rel (0) target = $region33
    $region32: #{tpu_custom_call.1} parent=1 // pred_region
      %75 = dma.done [#allocation3], 1024
    $region33: #{tpu_custom_call.1} parent=1 // pred_fallthru
      _
    // Predicated region
    $region34: #{tpu_custom_call.1} parent=1 // pred_check
      _
    $region35: #{tpu_custom_call.1} parent=1 // pred_check_branch
      %77 = sbr.rel (0) target = $region37
    $region36: #{tpu_custom_call.1} parent=1 // pred_region
      %79 = dma.done [#allocation6], 8192
    $region37: #{tpu_custom_call.1} parent=1 // pred_fallthru
      _
    // Predicated region
    $region38: #{tpu_custom_call.1} parent=1 // pred_check
      _
    $region39: #{tpu_custom_call.1} parent=1 // pred_check_branch
      %81 = sbr.rel (0) target = $region41
    $region40: #{tpu_custom_call.1} parent=1 // pred_region
      %83 = dma.done [#allocation6], 1024
    $region41: #{tpu_custom_call.1} parent=1 // pred_fallthru
      _
    // Predicated region
    $region42: #{tpu_custom_call.1} parent=1 // pred_check
      _
    $region43: #{tpu_custom_call.1} parent=1 // pred_check_branch
      %85 = sbr.rel (0) target = $region45
    $region44: #{tpu_custom_call.1} parent=1 // pred_region
      %87 = dma.done [#allocation9], 1024
    $region45: #{tpu_custom_call.1} parent=1 // pred_fallthru
      _
    %v88 = vld [vmem:[#allocation2] sm:$0xff]
    %v89 = vld [vmem:[#allocation2 + $0x8] sm:$0xff]
    %v90 = vld [vmem:[#allocation2 + $0x10] sm:$0xff]
    %v91 = vld [vmem:[#allocation2 + $0x18] sm:$0xff]
    %v92 = vld [vmem:[#allocation2 + $0x20] sm:$0xff]
    %v93 = vld [vmem:[#allocation2 + $0x28] sm:$0xff]
    %v94 = vld [vmem:[#allocation2 + $0x30] sm:$0xff]
    %v95 = vld [vmem:[#allocation2 + $0x38] sm:$0xff]
    %v96 = vpack.c.bf16 %v88, %v88
    %v97 = vpack.c.bf16 %v89, %v89
    %v98 = vpack.c.bf16 %v90, %v90
    %v99 = vpack.c.bf16 %v91, %v91
    %v100 = vpack.c.bf16 %v92, %v92
    %v101 = vpack.c.bf16 %v93, %v93
    %v102 = vpack.c.bf16 %v94, %v94
    %v103 = vpack.c.bf16 %v95, %v95
    %v104 = vld [vmem:[#allocation5] sm:$0xf]
    %v105 = vld [vmem:[#allocation5 + $0x4] sm:$0xf]
    %v106 = vld [vmem:[#allocation5 + $0x8] sm:$0xf]
    %v107 = vld [vmem:[#allocation5 + $0xc] sm:$0xf]
    %v108 = vld [vmem:[#allocation5 + $0x10] sm:$0xf]
    %v109 = vld [vmem:[#allocation5 + $0x14] sm:$0xf]
    %v110 = vld [vmem:[#allocation5 + $0x18] sm:$0xf]
    %v111 = vld [vmem:[#allocation5 + $0x1c] sm:$0xf]
    %v112 = vld [vmem:[#allocation5 + $0x20] sm:$0xf]
    %v113 = vld [vmem:[#allocation5 + $0x24] sm:$0xf]
    %v114 = vld [vmem:[#allocation5 + $0x28] sm:$0xf]
    %v115 = vld [vmem:[#allocation5 + $0x2c] sm:$0xf]
    %v116 = vld [vmem:[#allocation5 + $0x30] sm:$0xf]
    %v117 = vld [vmem:[#allocation5 + $0x34] sm:$0xf]
    %v118 = vld [vmem:[#allocation5 + $0x38] sm:$0xf]
    %v119 = vld [vmem:[#allocation5 + $0x3c] sm:$0xf]
    %v120 = vld [vmem:[#allocation5 + $0x40] sm:$0xf]
    %v121 = vld [vmem:[#allocation5 + $0x44] sm:$0xf]
    %v122 = vld [vmem:[#allocation5 + $0x48] sm:$0xf]
    %v123 = vld [vmem:[#allocation5 + $0x4c] sm:$0xf]
    %v124 = vld [vmem:[#allocation5 + $0x50] sm:$0xf]
    %v125 = vld [vmem:[#allocation5 + $0x54] sm:$0xf]
    %v126 = vld [vmem:[#allocation5 + $0x58] sm:$0xf]
    %v127 = vld [vmem:[#allocation5 + $0x5c] sm:$0xf]
    %v128 = vld [vmem:[#allocation5 + $0x60] sm:$0xf]
    %v129 = vld [vmem:[#allocation5 + $0x64] sm:$0xf]
    %v130 = vld [vmem:[#allocation5 + $0x68] sm:$0xf]
    %v131 = vld [vmem:[#allocation5 + $0x6c] sm:$0xf]
    %v132 = vld [vmem:[#allocation5 + $0x70] sm:$0xf]
    %v133 = vld [vmem:[#allocation5 + $0x74] sm:$0xf]
    %v134 = vld [vmem:[#allocation5 + $0x78] sm:$0xf]
    %v135 = vld [vmem:[#allocation5 + $0x7c] sm:$0xf]
    %v136 = vld [vmem:[#allocation5 + $0x80] sm:$0xf]
    %v137 = vld [vmem:[#allocation5 + $0x84] sm:$0xf]
    %v138 = vld [vmem:[#allocation5 + $0x88] sm:$0xf]
    %v139 = vld [vmem:[#allocation5 + $0x8c] sm:$0xf]
    %v140 = vld [vmem:[#allocation5 + $0x90] sm:$0xf]
    %v141 = vld [vmem:[#allocation5 + $0x94] sm:$0xf]
    %v142 = vld [vmem:[#allocation5 + $0x98] sm:$0xf]
    %v143 = vld [vmem:[#allocation5 + $0x9c] sm:$0xf]
    %v144 = vld [vmem:[#allocation5 + $0xa0] sm:$0xf]
    %v145 = vld [vmem:[#allocation5 + $0xa4] sm:$0xf]
    %v146 = vld [vmem:[#allocation5 + $0xa8] sm:$0xf]
    %v147 = vld [vmem:[#allocation5 + $0xac] sm:$0xf]
    %v148 = vld [vmem:[#allocation5 + $0xb0] sm:$0xf]
    %v149 = vld [vmem:[#allocation5 + $0xb4] sm:$0xf]
    %v150 = vld [vmem:[#allocation5 + $0xb8] sm:$0xf]
    %v151 = vld [vmem:[#allocation5 + $0xbc] sm:$0xf]
    %v152 = vld [vmem:[#allocation5 + $0xc0] sm:$0xf]
    %v153 = vld [vmem:[#allocation5 + $0xc4] sm:$0xf]
    %v154 = vld [vmem:[#allocation5 + $0xc8] sm:$0xf]
    %v155 = vld [vmem:[#allocation5 + $0xcc] sm:$0xf]
    %v156 = vld [vmem:[#allocation5 + $0xd0] sm:$0xf]
    %v157 = vld [vmem:[#allocation5 + $0xd4] sm:$0xf]
    %v158 = vld [vmem:[#allocation5 + $0xd8] sm:$0xf]
    %v159 = vld [vmem:[#allocation5 + $0xdc] sm:$0xf]
    %v160 = vld [vmem:[#allocation5 + $0xe0] sm:$0xf]
    %v161 = vld [vmem:[#allocation5 + $0xe4] sm:$0xf]
    %v162 = vld [vmem:[#allocation5 + $0xe8] sm:$0xf]
    %v163 = vld [vmem:[#allocation5 + $0xec] sm:$0xf]
    %v164 = vld [vmem:[#allocation5 + $0xf0] sm:$0xf]
    %v165 = vld [vmem:[#allocation5 + $0xf4] sm:$0xf]
    %v166 = vld [vmem:[#allocation5 + $0xf8] sm:$0xf]
    %v167 = vld [vmem:[#allocation5 + $0xfc] sm:$0xf]
    %v168 = vld [vmem:[#allocation5 + $0x100] sm:$0xf]
    %v169 = vld [vmem:[#allocation5 + $0x104] sm:$0xf]
    %v170 = vld [vmem:[#allocation5 + $0x108] sm:$0xf]
    %v171 = vld [vmem:[#allocation5 + $0x10c] sm:$0xf]
    %v172 = vld [vmem:[#allocation5 + $0x110] sm:$0xf]
    %v173 = vld [vmem:[#allocation5 + $0x114] sm:$0xf]
    %v174 = vld [vmem:[#allocation5 + $0x118] sm:$0xf]
    %v175 = vld [vmem:[#allocation5 + $0x11c] sm:$0xf]
    %v176 = vld [vmem:[#allocation5 + $0x120] sm:$0xf]
    %v177 = vld [vmem:[#allocation5 + $0x124] sm:$0xf]
    %v178 = vld [vmem:[#allocation5 + $0x128] sm:$0xf]
    %v179 = vld [vmem:[#allocation5 + $0x12c] sm:$0xf]
    %v180 = vld [vmem:[#allocation5 + $0x130] sm:$0xf]
    %v181 = vld [vmem:[#allocation5 + $0x134] sm:$0xf]
    %v182 = vld [vmem:[#allocation5 + $0x138] sm:$0xf]
    %v183 = vld [vmem:[#allocation5 + $0x13c] sm:$0xf]
    %v184 = vld [vmem:[#allocation5 + $0x140] sm:$0xf]
    %v185 = vld [vmem:[#allocation5 + $0x144] sm:$0xf]
    %v186 = vld [vmem:[#allocation5 + $0x148] sm:$0xf]
    %v187 = vld [vmem:[#allocation5 + $0x14c] sm:$0xf]
    %v188 = vld [vmem:[#allocation5 + $0x150] sm:$0xf]
    %v189 = vld [vmem:[#allocation5 + $0x154] sm:$0xf]
    %v190 = vld [vmem:[#allocation5 + $0x158] sm:$0xf]
    %v191 = vld [vmem:[#allocation5 + $0x15c] sm:$0xf]
    %v192 = vld [vmem:[#allocation5 + $0x160] sm:$0xf]
    %v193 = vld [vmem:[#allocation5 + $0x164] sm:$0xf]
    %v194 = vld [vmem:[#allocation5 + $0x168] sm:$0xf]
    %v195 = vld [vmem:[#allocation5 + $0x16c] sm:$0xf]
    %v196 = vld [vmem:[#allocation5 + $0x170] sm:$0xf]
    %v197 = vld [vmem:[#allocation5 + $0x174] sm:$0xf]
    %v198 = vld [vmem:[#allocation5 + $0x178] sm:$0xf]
    %v199 = vld [vmem:[#allocation5 + $0x17c] sm:$0xf]
    %v200 = vld [vmem:[#allocation5 + $0x180] sm:$0xf]
    %v201 = vld [vmem:[#allocation5 + $0x184] sm:$0xf]
    %v202 = vld [vmem:[#allocation5 + $0x188] sm:$0xf]
    %v203 = vld [vmem:[#allocation5 + $0x18c] sm:$0xf]
    %v204 = vld [vmem:[#allocation5 + $0x190] sm:$0xf]
    %v205 = vld [vmem:[#allocation5 + $0x194] sm:$0xf]
    %v206 = vld [vmem:[#allocation5 + $0x198] sm:$0xf]
    %v207 = vld [vmem:[#allocation5 + $0x19c] sm:$0xf]
    %v208 = vld [vmem:[#allocation5 + $0x1a0] sm:$0xf]
    %v209 = vld [vmem:[#allocation5 + $0x1a4] sm:$0xf]
    %v210 = vld [vmem:[#allocation5 + $0x1a8] sm:$0xf]
    %v211 = vld [vmem:[#allocation5 + $0x1ac] sm:$0xf]
    %v212 = vld [vmem:[#allocation5 + $0x1b0] sm:$0xf]
    %v213 = vld [vmem:[#allocation5 + $0x1b4] sm:$0xf]
    %v214 = vld [vmem:[#allocation5 + $0x1b8] sm:$0xf]
    %v215 = vld [vmem:[#allocation5 + $0x1bc] sm:$0xf]
    %v216 = vld [vmem:[#allocation5 + $0x1c0] sm:$0xf]
    %v217 = vld [vmem:[#allocation5 + $0x1c4] sm:$0xf]
    %v218 = vld [vmem:[#allocation5 + $0x1c8] sm:$0xf]
    %v219 = vld [vmem:[#allocation5 + $0x1cc] sm:$0xf]
    %v220 = vld [vmem:[#allocation5 + $0x1d0] sm:$0xf]
    %v221 = vld [vmem:[#allocation5 + $0x1d4] sm:$0xf]
    %v222 = vld [vmem:[#allocation5 + $0x1d8] sm:$0xf]
    %v223 = vld [vmem:[#allocation5 + $0x1dc] sm:$0xf]
    %v224 = vld [vmem:[#allocation5 + $0x1e0] sm:$0xf]
    %v225 = vld [vmem:[#allocation5 + $0x1e4] sm:$0xf]
    %v226 = vld [vmem:[#allocation5 + $0x1e8] sm:$0xf]
    %v227 = vld [vmem:[#allocation5 + $0x1ec] sm:$0xf]
    %v228 = vld [vmem:[#allocation5 + $0x1f0] sm:$0xf]
    %v229 = vld [vmem:[#allocation5 + $0x1f4] sm:$0xf]
    %v230 = vld [vmem:[#allocation5 + $0x1f8] sm:$0xf]
    %v231 = vld [vmem:[#allocation5 + $0x1fc] sm:$0xf]
    %v232 = vld [vmem:[%s2] sm:$0x1]
    %v234 = vperm.slane %v232, 0
    %v364 = vunpack.c.l.b16 %v104
    %v365 = vunpack.c.l.b16 %v105
    %v366 = vunpack.c.l.b16 %v106
    %v367 = vunpack.c.l.b16 %v107
    %v368 = vunpack.c.l.b16 %v108
    %v369 = vunpack.c.l.b16 %v109
    %v370 = vunpack.c.l.b16 %v110
    %v371 = vunpack.c.l.b16 %v111
    %v372 = vunpack.c.l.b16 %v112
    %v373 = vunpack.c.l.b16 %v113
    %v374 = vunpack.c.l.b16 %v114
    %v375 = vunpack.c.l.b16 %v115
    %v376 = vunpack.c.l.b16 %v116
    %v377 = vunpack.c.l.b16 %v117
    %v378 = vunpack.c.l.b16 %v118
    %v379 = vunpack.c.l.b16 %v119
    %v380 = vunpack.c.l.b16 %v120
    %v381 = vunpack.c.l.b16 %v121
    %v382 = vunpack.c.l.b16 %v122
    %v383 = vunpack.c.l.b16 %v123
    %v384 = vunpack.c.l.b16 %v124
    %v385 = vunpack.c.l.b16 %v125
    %v386 = vunpack.c.l.b16 %v126
    %v387 = vunpack.c.l.b16 %v127
    %v388 = vunpack.c.l.b16 %v128
    %v389 = vunpack.c.l.b16 %v129
    %v390 = vunpack.c.l.b16 %v130
    %v391 = vunpack.c.l.b16 %v131
    %v392 = vunpack.c.l.b16 %v132
    %v393 = vunpack.c.l.b16 %v133
    %v394 = vunpack.c.l.b16 %v134
    %v395 = vunpack.c.l.b16 %v135
    %v396 = vunpack.c.l.b16 %v136
    %v397 = vunpack.c.l.b16 %v137
    %v398 = vunpack.c.l.b16 %v138
    %v399 = vunpack.c.l.b16 %v139
    %v400 = vunpack.c.l.b16 %v140
    %v401 = vunpack.c.l.b16 %v141
    %v402 = vunpack.c.l.b16 %v142
    %v403 = vunpack.c.l.b16 %v143
    %v404 = vunpack.c.l.b16 %v144
    %v405 = vunpack.c.l.b16 %v145
    %v406 = vunpack.c.l.b16 %v146
    %v407 = vunpack.c.l.b16 %v147
    %v408 = vunpack.c.l.b16 %v148
    %v409 = vunpack.c.l.b16 %v149
    %v410 = vunpack.c.l.b16 %v150
    %v411 = vunpack.c.l.b16 %v151
    %v412 = vunpack.c.l.b16 %v152
    %v413 = vunpack.c.l.b16 %v153
    %v414 = vunpack.c.l.b16 %v154
    %v415 = vunpack.c.l.b16 %v155
    %v416 = vunpack.c.l.b16 %v156
    %v417 = vunpack.c.l.b16 %v157
    %v418 = vunpack.c.l.b16 %v158
    %v419 = vunpack.c.l.b16 %v159
    %v420 = vunpack.c.l.b16 %v160
    %v421 = vunpack.c.l.b16 %v161
    %v422 = vunpack.c.l.b16 %v162
    %v423 = vunpack.c.l.b16 %v163
    %v424 = vunpack.c.l.b16 %v164
    %v425 = vunpack.c.l.b16 %v165
    %v426 = vunpack.c.l.b16 %v166
    %v427 = vunpack.c.l.b16 %v167
    %v428 = vunpack.c.l.b16 %v168
    %v429 = vunpack.c.l.b16 %v169
    %v430 = vunpack.c.l.b16 %v170
    %v431 = vunpack.c.l.b16 %v171
    %v432 = vunpack.c.l.b16 %v172
    %v433 = vunpack.c.l.b16 %v173
    %v434 = vunpack.c.l.b16 %v174
    %v435 = vunpack.c.l.b16 %v175
    %v436 = vunpack.c.l.b16 %v176
    %v437 = vunpack.c.l.b16 %v177
    %v438 = vunpack.c.l.b16 %v178
    %v439 = vunpack.c.l.b16 %v179
    %v440 = vunpack.c.l.b16 %v180
    %v441 = vunpack.c.l.b16 %v181
    %v442 = vunpack.c.l.b16 %v182
    %v443 = vunpack.c.l.b16 %v183
    %v444 = vunpack.c.l.b16 %v184
    %v445 = vunpack.c.l.b16 %v185
    %v446 = vunpack.c.l.b16 %v186
    %v447 = vunpack.c.l.b16 %v187
    %v448 = vunpack.c.l.b16 %v188
    %v449 = vunpack.c.l.b16 %v189
    %v450 = vunpack.c.l.b16 %v190
    %v451 = vunpack.c.l.b16 %v191
    %v452 = vunpack.c.l.b16 %v192
    %v453 = vunpack.c.l.b16 %v193
    %v454 = vunpack.c.l.b16 %v194
    %v455 = vunpack.c.l.b16 %v195
    %v456 = vunpack.c.l.b16 %v196
    %v457 = vunpack.c.l.b16 %v197
    %v458 = vunpack.c.l.b16 %v198
    %v459 = vunpack.c.l.b16 %v199
    %v460 = vunpack.c.l.b16 %v200
    %v461 = vunpack.c.l.b16 %v201
    %v462 = vunpack.c.l.b16 %v202
    %v463 = vunpack.c.l.b16 %v203
    %v464 = vunpack.c.l.b16 %v204
    %v465 = vunpack.c.l.b16 %v205
    %v466 = vunpack.c.l.b16 %v206
    %v467 = vunpack.c.l.b16 %v207
    %v468 = vunpack.c.l.b16 %v208
    %v469 = vunpack.c.l.b16 %v209
    %v470 = vunpack.c.l.b16 %v210
    %v471 = vunpack.c.l.b16 %v211
    %v472 = vunpack.c.l.b16 %v212
    %v473 = vunpack.c.l.b16 %v213
    %v474 = vunpack.c.l.b16 %v214
    %v475 = vunpack.c.l.b16 %v215
    %v476 = vunpack.c.l.b16 %v216
    %v477 = vunpack.c.l.b16 %v217
    %v478 = vunpack.c.l.b16 %v218
    %v479 = vunpack.c.l.b16 %v219
    %v480 = vunpack.c.l.b16 %v220
    %v481 = vunpack.c.l.b16 %v221
    %v482 = vunpack.c.l.b16 %v222
    %v483 = vunpack.c.l.b16 %v223
    %v484 = vunpack.c.l.b16 %v224
    %v485 = vunpack.c.l.b16 %v225
    %v486 = vunpack.c.l.b16 %v226
    %v487 = vunpack.c.l.b16 %v227
    %v488 = vunpack.c.l.b16 %v228
    %v489 = vunpack.c.l.b16 %v229
    %v490 = vunpack.c.l.b16 %v230
    %v491 = vunpack.c.l.b16 %v231
    %v492 = vpack.c.b16 %v365, %v364
    %v493 = vpack.c.b16 %v367, %v366
    %v494 = vpack.c.b16 %v369, %v368
    %v495 = vpack.c.b16 %v371, %v370
    %v496 = vpack.c.b16 %v373, %v372
    %v497 = vpack.c.b16 %v375, %v374
    %v498 = vpack.c.b16 %v377, %v376
    %v499 = vpack.c.b16 %v379, %v378
    %v500 = vpack.c.b16 %v381, %v380
    %v501 = vpack.c.b16 %v383, %v382
    %v502 = vpack.c.b16 %v385, %v384
    %v503 = vpack.c.b16 %v387, %v386
    %v504 = vpack.c.b16 %v389, %v388
    %v505 = vpack.c.b16 %v391, %v390
    %v506 = vpack.c.b16 %v393, %v392
    %v507 = vpack.c.b16 %v395, %v394
    %v508 = vpack.c.b16 %v397, %v396
    %v509 = vpack.c.b16 %v399, %v398
    %v510 = vpack.c.b16 %v401, %v400
    %v511 = vpack.c.b16 %v403, %v402
    %v512 = vpack.c.b16 %v405, %v404
    %v513 = vpack.c.b16 %v407, %v406
    %v514 = vpack.c.b16 %v409, %v408
    %v515 = vpack.c.b16 %v411, %v410
    %v516 = vpack.c.b16 %v413, %v412
    %v517 = vpack.c.b16 %v415, %v414
    %v518 = vpack.c.b16 %v417, %v416
    %v519 = vpack.c.b16 %v419, %v418
    %v520 = vpack.c.b16 %v421, %v420
    %v521 = vpack.c.b16 %v423, %v422
    %v522 = vpack.c.b16 %v425, %v424
    %v523 = vpack.c.b16 %v427, %v426
    %v524 = vpack.c.b16 %v429, %v428
    %v525 = vpack.c.b16 %v431, %v430
    %v526 = vpack.c.b16 %v433, %v432
    %v527 = vpack.c.b16 %v435, %v434
    %v528 = vpack.c.b16 %v437, %v436
    %v529 = vpack.c.b16 %v439, %v438
    %v530 = vpack.c.b16 %v441, %v440
    %v531 = vpack.c.b16 %v443, %v442
    %v532 = vpack.c.b16 %v445, %v444
    %v533 = vpack.c.b16 %v447, %v446
    %v534 = vpack.c.b16 %v449, %v448
    %v535 = vpack.c.b16 %v451, %v450
    %v536 = vpack.c.b16 %v453, %v452
    %v537 = vpack.c.b16 %v455, %v454
    %v538 = vpack.c.b16 %v457, %v456
    %v539 = vpack.c.b16 %v459, %v458
    %v540 = vpack.c.b16 %v461, %v460
    %v541 = vpack.c.b16 %v463, %v462
    %v542 = vpack.c.b16 %v465, %v464
    %v543 = vpack.c.b16 %v467, %v466
    %v544 = vpack.c.b16 %v469, %v468
    %v545 = vpack.c.b16 %v471, %v470
    %v546 = vpack.c.b16 %v473, %v472
    %v547 = vpack.c.b16 %v475, %v474
    %v548 = vpack.c.b16 %v477, %v476
    %v549 = vpack.c.b16 %v479, %v478
    %v550 = vpack.c.b16 %v481, %v480
    %v551 = vpack.c.b16 %v483, %v482
    %v552 = vpack.c.b16 %v485, %v484
    %v553 = vpack.c.b16 %v487, %v486
    %v554 = vpack.c.b16 %v489, %v488
    %v555 = vpack.c.b16 %v491, %v490
    %620 = vmatpush.bf16.msra.mxu0 %v499
    %621 = vmatpush.bf16.msra.mxu0 %v498
    %622 = vmatpush.bf16.msra.mxu0 %v497
    %623 = vmatpush.bf16.msra.mxu0 %v496
    %624 = vmatpush.bf16.msra.mxu0 %v495
    %625 = vmatpush.bf16.msra.mxu0 %v494
    %626 = vmatpush.bf16.msra.mxu0 %v493
    %627 = vmatpush.bf16.msra.mxu0 %v492
    %628 = vmatmul.bf16.gmra.mxu0 %v96
    %v629 = vpop.f32.mrf.mxu0
    %v630 = vadd.f32 %v234, %v629
    %v631 = vpop.f32.mrf.mxu0
    %632 = vdwg.mxu0
    %633 = vmatpush.bf16.msra.mxu0 %v507
    %634 = vmatpush.bf16.msra.mxu0 %v506
    %635 = vmatpush.bf16.msra.mxu0 %v505
    %636 = vmatpush.bf16.msra.mxu0 %v504
    %637 = vmatpush.bf16.msra.mxu0 %v503
    %638 = vmatpush.bf16.msra.mxu0 %v502
    %639 = vmatpush.bf16.msra.mxu0 %v501
    %640 = vmatpush.bf16.msra.mxu0 %v500
    %641 = vmatmul.bf16.gmra.mxu0 %v97
    %v642 = vpop.f32.mrf.mxu0
    %v643 = vadd.f32 %v630, %v642
    %v644 = vpop.f32.mrf.mxu0
    %645 = vdwg.mxu0
    %646 = vmatpush.bf16.msra.mxu0 %v515
    %647 = vmatpush.bf16.msra.mxu0 %v514
    %648 = vmatpush.bf16.msra.mxu0 %v513
    %649 = vmatpush.bf16.msra.mxu0 %v512
    %650 = vmatpush.bf16.msra.mxu0 %v511
    %651 = vmatpush.bf16.msra.mxu0 %v510
    %652 = vmatpush.bf16.msra.mxu0 %v509
    %653 = vmatpush.bf16.msra.mxu0 %v508
    %654 = vmatmul.bf16.gmra.mxu0 %v98
    %v655 = vpop.f32.mrf.mxu0
    %v656 = vadd.f32 %v643, %v655
    %v657 = vpop.f32.mrf.mxu0
    %658 = vdwg.mxu0
    %659 = vmatpush.bf16.msra.mxu0 %v523
    %660 = vmatpush.bf16.msra.mxu0 %v522
    %661 = vmatpush.bf16.msra.mxu0 %v521
    %662 = vmatpush.bf16.msra.mxu0 %v520
    %663 = vmatpush.bf16.msra.mxu0 %v519
    %664 = vmatpush.bf16.msra.mxu0 %v518
    %665 = vmatpush.bf16.msra.mxu0 %v517
    %666 = vmatpush.bf16.msra.mxu0 %v516
    %667 = vmatmul.bf16.gmra.mxu0 %v99
    %v668 = vpop.f32.mrf.mxu0
    %v669 = vadd.f32 %v656, %v668
    %v670 = vpop.f32.mrf.mxu0
    %671 = vdwg.mxu0
    %672 = vmatpush.bf16.msra.mxu0 %v531
    %673 = vmatpush.bf16.msra.mxu0 %v530
    %674 = vmatpush.bf16.msra.mxu0 %v529
    %675 = vmatpush.bf16.msra.mxu0 %v528
    %676 = vmatpush.bf16.msra.mxu0 %v527
    %677 = vmatpush.bf16.msra.mxu0 %v526
    %678 = vmatpush.bf16.msra.mxu0 %v525
    %679 = vmatpush.bf16.msra.mxu0 %v524
    %680 = vmatmul.bf16.gmra.mxu0 %v100
    %v681 = vpop.f32.mrf.mxu0
    %v682 = vadd.f32 %v669, %v681
    %v683 = vpop.f32.mrf.mxu0
    %684 = vdwg.mxu0
    %685 = vmatpush.bf16.msra.mxu0 %v539
    %686 = vmatpush.bf16.msra.mxu0 %v538
    %687 = vmatpush.bf16.msra.mxu0 %v537
    %688 = vmatpush.bf16.msra.mxu0 %v536
    %689 = vmatpush.bf16.msra.mxu0 %v535
    %690 = vmatpush.bf16.msra.mxu0 %v534
    %691 = vmatpush.bf16.msra.mxu0 %v533
    %692 = vmatpush.bf16.msra.mxu0 %v532
    %693 = vmatmul.bf16.gmra.mxu0 %v101
    %v694 = vpop.f32.mrf.mxu0
    %v695 = vadd.f32 %v682, %v694
    %v696 = vpop.f32.mrf.mxu0
    %697 = vdwg.mxu0
    %698 = vmatpush.bf16.msra.mxu0 %v547
    %699 = vmatpush.bf16.msra.mxu0 %v546
    %700 = vmatpush.bf16.msra.mxu0 %v545
    %701 = vmatpush.bf16.msra.mxu0 %v544
    %702 = vmatpush.bf16.msra.mxu0 %v543
    %703 = vmatpush.bf16.msra.mxu0 %v542
    %704 = vmatpush.bf16.msra.mxu0 %v541
    %705 = vmatpush.bf16.msra.mxu0 %v540
    %706 = vmatmul.bf16.gmra.mxu0 %v102
    %v707 = vpop.f32.mrf.mxu0
    %v708 = vadd.f32 %v695, %v707
    %v709 = vpop.f32.mrf.mxu0
    %710 = vdwg.mxu0
    %711 = vmatpush.bf16.msra.mxu0 %v555
    %712 = vmatpush.bf16.msra.mxu0 %v554
    %713 = vmatpush.bf16.msra.mxu0 %v553
    %714 = vmatpush.bf16.msra.mxu0 %v552
    %715 = vmatpush.bf16.msra.mxu0 %v551
    %716 = vmatpush.bf16.msra.mxu0 %v550
    %717 = vmatpush.bf16.msra.mxu0 %v549
    %718 = vmatpush.bf16.msra.mxu0 %v548
    %719 = vmatmul.bf16.gmra.mxu0 %v103
    %v720 = vpop.f32.mrf.mxu0
    %v721 = vadd.f32 %v708, %v720
    %v722 = vpop.f32.mrf.mxu0
    %723 = vdwg.mxu0
    %v724 = vmax.f32 %v721, 0.0
    %v725 = vpack.c.bf16 %v724, %v724
    %v726 = vld [vmem:[#allocation7] sm:$0xf]
    %v727 = vld [vmem:[#allocation7 + $0x4] sm:$0xf]
    %v728 = vld [vmem:[#allocation7 + $0x8] sm:$0xf]
    %v729 = vld [vmem:[#allocation7 + $0xc] sm:$0xf]
    %v730 = vld [vmem:[#allocation7 + $0x10] sm:$0xf]
    %v731 = vld [vmem:[#allocation7 + $0x14] sm:$0xf]
    %v732 = vld [vmem:[#allocation7 + $0x18] sm:$0xf]
    %v733 = vld [vmem:[#allocation7 + $0x1c] sm:$0xf]
    %v734 = vld [vmem:[#allocation7 + $0x20] sm:$0xf]
    %v735 = vld [vmem:[#allocation7 + $0x24] sm:$0xf]
    %v736 = vld [vmem:[#allocation7 + $0x28] sm:$0xf]
    %v737 = vld [vmem:[#allocation7 + $0x2c] sm:$0xf]
    %v738 = vld [vmem:[#allocation7 + $0x30] sm:$0xf]
    %v739 = vld [vmem:[#allocation7 + $0x34] sm:$0xf]
    %v740 = vld [vmem:[#allocation7 + $0x38] sm:$0xf]
    %v741 = vld [vmem:[#allocation7 + $0x3c] sm:$0xf]
    %v742 = vld [vmem:[%s4] sm:$0x1]
    %v744 = vperm.slane %v742, 0
    %v762 = vunpack.c.l.b16 %v726
    %v763 = vunpack.c.l.b16 %v727
    %v764 = vunpack.c.l.b16 %v728
    %v765 = vunpack.c.l.b16 %v729
    %v766 = vunpack.c.l.b16 %v730
    %v767 = vunpack.c.l.b16 %v731
    %v768 = vunpack.c.l.b16 %v732
    %v769 = vunpack.c.l.b16 %v733
    %v770 = vunpack.c.l.b16 %v734
    %v771 = vunpack.c.l.b16 %v735
    %v772 = vunpack.c.l.b16 %v736
    %v773 = vunpack.c.l.b16 %v737
    %v774 = vunpack.c.l.b16 %v738
    %v775 = vunpack.c.l.b16 %v739
    %v776 = vunpack.c.l.b16 %v740
    %v777 = vunpack.c.l.b16 %v741
    %v778 = vpack.c.b16 %v763, %v762
    %v779 = vpack.c.b16 %v765, %v764
    %v780 = vpack.c.b16 %v767, %v766
    %v781 = vpack.c.b16 %v769, %v768
    %v782 = vpack.c.b16 %v771, %v770
    %v783 = vpack.c.b16 %v773, %v772
    %v784 = vpack.c.b16 %v775, %v774
    %v785 = vpack.c.b16 %v777, %v776
    %794 = vmatpush.bf16.msra.mxu0 %v785
    %795 = vmatpush.bf16.msra.mxu0 %v784
    %796 = vmatpush.bf16.msra.mxu0 %v783
    %797 = vmatpush.bf16.msra.mxu0 %v782
    %798 = vmatpush.bf16.msra.mxu0 %v781
    %799 = vmatpush.bf16.msra.mxu0 %v780
    %800 = vmatpush.bf16.msra.mxu0 %v779
    %801 = vmatpush.bf16.msra.mxu0 %v778
    %802 = vmatmul.bf16.gmra.mxu0 %v725
    %v803 = vpop.f32.mrf.mxu0
    %v804 = vadd.f32 %v744, %v803
    %v805 = vpop.f32.mrf.mxu0
    %806 = vdwg.mxu0
    %v807 = vxor.u32 %v804, 2147483648
    %v808 = vmul.f32 %v807, 1.442695
    %v809 = vpow.pop %v808
    %v810 = vadd.f32 %v809, 1.0
    %v811 = vrcp.pop %v810
    %v812 = vmul.f32 %v810, %v811
    %v813 = vsub.f32 1.0, %v812
    %v814 = vmul.f32 %v811, %v813
    %v815 = vadd.f32 %v811, %v814
    %vm816 = vweird.f32 %v810
    %vm817 = vweird.f32 %v811
    %vm818 = vmor %vm816, %vm817
    %v819 = vsel %vm818, %v811, %v815
    %v820 = vand.u32 2147483647, %v810
    %vm821 = vcmp.eq.f32.partialorder %v820, 8.507059e+37
    %v822 = vand.u32 %v810, 2147483648
    %v823 = vor.u32 1.1754944e-38, %v822
    %v824 = vsel %vm821, %v823, %v819
    %v825 = vmul.f32 1.0, %v824
    %v826 = vpack.c.bf16 %v825, %v825
    %v827 = vld [vmem:[#allocation8] sm:$0xf]
    %v828 = vld [vmem:[#allocation8 + $0x4] sm:$0xf]
    %v829 = vld [vmem:[#allocation8 + $0x8] sm:$0xf]
    %v830 = vld [vmem:[#allocation8 + $0xc] sm:$0xf]
    %v831 = vld [vmem:[#allocation8 + $0x10] sm:$0xf]
    %v832 = vld [vmem:[#allocation8 + $0x14] sm:$0xf]
    %v833 = vld [vmem:[#allocation8 + $0x18] sm:$0xf]
    %v834 = vld [vmem:[#allocation8 + $0x1c] sm:$0xf]
    %v835 = vld [vmem:[#allocation8 + $0x20] sm:$0xf]
    %v836 = vld [vmem:[#allocation8 + $0x24] sm:$0xf]
    %v837 = vld [vmem:[#allocation8 + $0x28] sm:$0xf]
    %v838 = vld [vmem:[#allocation8 + $0x2c] sm:$0xf]
    %v839 = vld [vmem:[#allocation8 + $0x30] sm:$0xf]
    %v840 = vld [vmem:[#allocation8 + $0x34] sm:$0xf]
    %v841 = vld [vmem:[#allocation8 + $0x38] sm:$0xf]
    %v842 = vld [vmem:[#allocation8 + $0x3c] sm:$0xf]
    %v843 = vld [vmem:[%s6] sm:$0x1]
    %v845 = vperm.slane %v843, 0
    %v863 = vunpack.c.l.b16 %v827
    %v864 = vunpack.c.l.b16 %v828
    %v865 = vunpack.c.l.b16 %v829
    %v866 = vunpack.c.l.b16 %v830
    %v867 = vunpack.c.l.b16 %v831
    %v868 = vunpack.c.l.b16 %v832
    %v869 = vunpack.c.l.b16 %v833
    %v870 = vunpack.c.l.b16 %v834
    %v871 = vunpack.c.l.b16 %v835
    %v872 = vunpack.c.l.b16 %v836
    %v873 = vunpack.c.l.b16 %v837
    %v874 = vunpack.c.l.b16 %v838
    %v875 = vunpack.c.l.b16 %v839
    %v876 = vunpack.c.l.b16 %v840
    %v877 = vunpack.c.l.b16 %v841
    %v878 = vunpack.c.l.b16 %v842
    %v879 = vpack.c.b16 %v864, %v863
    %v880 = vpack.c.b16 %v866, %v865
    %v881 = vpack.c.b16 %v868, %v867
    %v882 = vpack.c.b16 %v870, %v869
    %v883 = vpack.c.b16 %v872, %v871
    %v884 = vpack.c.b16 %v874, %v873
    %v885 = vpack.c.b16 %v876, %v875
    %v886 = vpack.c.b16 %v878, %v877
    %895 = vmatpush.bf16.msra.mxu0 %v886
    %896 = vmatpush.bf16.msra.mxu0 %v885
    %897 = vmatpush.bf16.msra.mxu0 %v884
    %898 = vmatpush.bf16.msra.mxu0 %v883
    %899 = vmatpush.bf16.msra.mxu0 %v882
    %900 = vmatpush.bf16.msra.mxu0 %v881
    %901 = vmatpush.bf16.msra.mxu0 %v880
    %902 = vmatpush.bf16.msra.mxu0 %v879
    %903 = vmatmul.bf16.gmra.mxu0 %v826
    %v904 = vpop.f32.mrf.mxu0
    %v905 = vadd.f32 %v845, %v904
    %v906 = vpop.f32.mrf.mxu0
    %907 = vdwg.mxu0
    %908 = vst [vmem:[#allocation10] sm:$0xff] %v905
    // Predicated region
    $region46: #{tpu_custom_call.1} parent=1 // pred_check
      _
    $region47: #{tpu_custom_call.1} parent=1 // pred_check_branch
      %910 = sbr.rel (0) target = $region49
    $region48: #{tpu_custom_call.1} parent=1 // pred_region
      %912 = vsyncadd [#allocation4], 0
      %s914 = sshll.u32 [#allocation10], 4
      %s915 = int_to_ptr.vmem [resolvable:$true] %s914
      %s916 = sshll.u32 %s7, 4
      %s917 = int_to_ptr.hbm [resolvable:$true] %s916
      %919 = dma.vmem_to_hbm [thread:$0]  %s915, 128, %s917, [#allocation4]
    $region49: #{tpu_custom_call.1} parent=1 // pred_fallthru
      _
    // Predicated region
    $region50: #{tpu_custom_call.1} parent=1 // pred_check
      _
    $region51: #{tpu_custom_call.1} parent=1 // pred_check_branch
      %921 = sbr.rel (0) target = $region53
    $region52: #{tpu_custom_call.1} parent=1 // pred_region
      %923 = dma.done [#allocation4], 128
    $region53: #{tpu_custom_call.1} parent=1 // pred_fallthru
      _
    %924 = vsyncpa [#allocation3], 1
    %925 = vsyncpa [#allocation6], 1
    %926 = vsyncpa [#allocation9], 1
    %927 = vsyncpa [#allocation4], 1

</llo_original>
